<compile_context>
chip_gen: v7x
topology: tpu7x:2x2x1
jax: 0.10.0
libtpu: 0.0.40
codegen_flags: <defaults>
</compile_context>

<pallas_src>
import functools
import math

import jax
import jax.numpy as jnp
import numpy as np
from jax.experimental import pallas as pl
from jax.experimental.pallas import tpu as pltpu


# --------------------------------------------------------------------------
# In-kernel math helpers (traced inside the Pallas body)
# --------------------------------------------------------------------------
def _erf_f32(x):
    # XLA's single-precision rational approximation of erf, reproducing
    # torch.nn.GELU() exact-erf semantics at f32 precision.
    x = jnp.clip(x, -4.0, 4.0)
    z = x * x
    alpha = (-2.72614225801306e-10, 2.77068142495902e-08, -2.10102402082508e-06,
             -5.69250639462346e-05, -7.34990630326855e-04, -2.95459980854025e-03,
             -1.60960333262415e-02)
    beta = (-1.45660718464996e-05, -2.13374055278905e-04, -1.68282697438203e-03,
            -7.37332916720468e-03, -1.42647390514189e-02)
    num = alpha[0]
    for c in alpha[1:]:
        num = num * z + c
    num = num * x
    den = beta[0]
    for c in beta[1:]:
        den = den * z + c
    return num / den          # exact divide (parity with the f32 reference)


def _gelu_exact(x):
    return 0.5 * x * (1.0 + _erf_f32(x * (1.0 / math.sqrt(2.0))))


def _layernorm(x, w, b, eps=1e-5):
    mu = jnp.mean(x, axis=-1, keepdims=True)
    xc = x - mu
    var = jnp.mean(xc * xc, axis=-1, keepdims=True)
    return xc * jax.lax.rsqrt(var + eps) * w + b


# --------------------------------------------------------------------------
# Pallas kernel: one full transformer Block for a tile of `bt` batch elements
# --------------------------------------------------------------------------
def block_kernel(x_ref, ln1w_ref, ln1b_ref, wqkv_ref, wproj_ref, bproj_ref,
                 ln2w_ref, ln2b_ref, w1_ref, b1_ref, w2_ref, b2_ref,
                 o_ref, attn_scr,
                 *, bt, seq, num_heads, head_dim):
    C = num_heads * head_dim
    rows = bt * seq
    bf16 = jnp.bfloat16

    x = x_ref[...]                                        # (rows, C) f32

    # ---- norm1 (f32) ----
    xn = _layernorm(x, ln1w_ref[...], ln1b_ref[...])
    xn_b = xn.astype(bf16)                                # MXU operand

    # ---- fused QKV: one lane-dense (rows, C) x (C, 3C) matmul ----
    # (1/sqrt(head_dim) scale is pre-folded into the q columns of wqkv)
    qkv = jnp.dot(xn_b, wqkv_ref[...],
                  preferred_element_type=jnp.float32)     # (rows, 3C) f32

    # ---- per-head attention; head outputs land in VMEM scratch lanes ----
    for h in range(num_heads):                            # static unroll
        lo = h * head_dim
        hi = lo + head_dim
        # static lane slices of the fused QKV output; leading-dim reshape is
        # layout-free (minor dim unchanged)
        q3 = qkv[:, lo:hi].reshape(bt, seq, head_dim).astype(bf16)
        k3 = qkv[:, C + lo:C + hi].reshape(bt, seq, head_dim).astype(bf16)
        v3 = qkv[:, 2 * C + lo:2 * C + hi].reshape(bt, seq, head_dim).astype(bf16)

        # scores: contract head_dim against head_dim (no explicit k.T),
        # batched over the batch-tile dim.
        s = jax.lax.dot_general(q3, k3, (((2,), (2,)), ((0,), (0,))),
                                preferred_element_type=jnp.float32)  # (bt,seq,seq)
        s = s - jnp.max(s, axis=-1, keepdims=True)
        p = jnp.exp(s)                                    # f32 softmax math
        p = p * pl.reciprocal(jnp.sum(p, axis=-1, keepdims=True), approx=True)

        o_h = jax.lax.dot_general(p.astype(bf16), v3,
                                  (((2,), (1,)), ((0,), (0,))),
                                  preferred_element_type=jnp.float32)  # (bt,seq,D)
        # static-lane store into the (rows, C) scratch -> heads re-packed
        attn_scr[:, lo:hi] = o_h.reshape(rows, head_dim)

    # ---- fused output projection: ONE (rows, C) x (C, C) matmul, K = C ----
    proj = jnp.dot(attn_scr[...].astype(bf16), wproj_ref[...],
                   preferred_element_type=jnp.float32)

    # drop_path / dropout are identities (p = 0, eval mode)
    x = x + proj + bproj_ref[...]                         # residual 1 (+ bias)

    # ---- norm2 + MLP ----
    xn2 = _layernorm(x, ln2w_ref[...], ln2b_ref[...])
    h1 = jnp.dot(xn2.astype(bf16), w1_ref[...],
                 preferred_element_type=jnp.float32) + b1_ref[...]
    h1 = _gelu_exact(h1)                                  # f32 VPU/EUP math
    # TODO(synk): evaluate the erf polynomial in bf16 on v6e/v7x (bf16 VALU);
    # keep f32 on v5e.
    h2 = jnp.dot(h1.astype(bf16), w2_ref[...],
                 preferred_element_type=jnp.float32) + b2_ref[...]

    o_ref[...] = (x + h2).astype(o_ref.dtype)             # residual 2


# --------------------------------------------------------------------------
# Batch-tile heuristic: rows = bt*N 8-aligned (or full array), near 512-1024,
# and nb >= 2 when possible (feeds v7x's two TensorCores).
# --------------------------------------------------------------------------
def _pick_batch_tile(B, N):
    target = 768
    best_key, best_bt = None, B
    for bt in range(1, B + 1):
        if B % bt:
            continue
        rows = bt * N
        if rows % 8 != 0 and bt != B:      # (8,128) sublane alignment
            continue
        nb = B // bt
        key = (0 if 512 <= rows <= 1024 else 1,   # rows sweet spot
               0 if nb >= 2 else 1,               # megacore-friendly
               abs(rows - target))
        if best_key is None or key < best_key:
            best_key, best_bt = key, bt
    return best_bt


# --------------------------------------------------------------------------
# Wrapper
# --------------------------------------------------------------------------
def vit_block(x, params, num_heads):
    B, N, C = x.shape
    D = C // num_heads
    hidden = params["w1"].shape[1]
    scale = D ** -0.5
    bf16 = jnp.bfloat16

    # Trace-time weight preprocessing (free): fold the softmax scale into the
    # q columns of the fused QKV weight, cast all MXU operands to bf16.
    wqkv = params["wqkv"]                                  # (C, 3C), (q|k|v)
    wqkv_b = jnp.concatenate([wqkv[:, :C] * scale, wqkv[:, C:]],
                             axis=1).astype(bf16)          # (C, 3C) bf16
    wproj_b = params["wproj"].astype(bf16)                 # (C, C)  bf16
    w1_b = params["w1"].astype(bf16)                       # (C, hidden)
    w2_b = params["w2"].astype(bf16)                       # (hidden, C)

    bt = _pick_batch_tile(B, N)
    nb = B // bt
    rows = bt * N
    x2 = x.reshape(B * N, C)                               # layout plumbing only

    kernel = functools.partial(block_kernel, bt=bt, seq=N,
                               num_heads=num_heads, head_dim=D)

    def full(shape):
        n = len(shape)
        return pl.BlockSpec(shape, lambda i, _n=n: (0,) * _n)

    # TODO(synk): for v7x, add pipeline_mode=pl.Buffered(1) on these resident
    # weight specs (constant index_map; no second buffer needed) and verify in
    # the Mosaic dump that they are DMA'd once, not per grid step.
    in_specs = [
        pl.BlockSpec((rows, C), lambda i: (i, 0)),         # x slab (f32)
        full((1, C)), full((1, C)),                        # ln1 w/b (f32)
        full((C, 3 * C)),                                  # fused wqkv (bf16)
        full((C, C)),                                      # wproj (bf16)
        full((1, C)),                                      # proj bias (f32)
        full((1, C)), full((1, C)),                        # ln2 w/b (f32)
        full((C, hidden)), full((1, hidden)),              # fc1 w (bf16) / b
        full((hidden, C)), full((1, C)),                   # fc2 w (bf16) / b
    ]

    # TODO(synk): at real ViT sizes (N=196) pad N to a multiple of 8 (e.g. 256)
    # and mask the softmax so the (bt, N, N) score tensor is (8,128)-aligned.
    out = pl.pallas_call(
        kernel,
        out_shape=jax.ShapeDtypeStruct((B * N, C), x.dtype),
        grid_spec=pltpu.PrefetchScalarGridSpec(
            num_scalar_prefetch=0,
            grid=(nb,),
            in_specs=in_specs,
            out_specs=pl.BlockSpec((rows, C), lambda i: (i, 0)),
            scratch_shapes=[pltpu.VMEM((rows, C), jnp.float32)],  # head repack
        ),
        compiler_params=pltpu.CompilerParams(
            dimension_semantics=("parallel",),
            vmem_limit_bytes=64 * 1024 * 1024),
    )(x2, params["ln1_w"], params["ln1_b"], wqkv_b, wproj_b, params["bproj"],
      params["ln2_w"], params["ln2_b"], w1_b, params["b1"], w2_b, params["b2"])
    return out.reshape(B, N, C)


# --------------------------------------------------------------------------
# Pure-JAX reference (mirrors the PyTorch forward, full f32)
# --------------------------------------------------------------------------
def ref_block(x, p, num_heads):
    B, N, C = x.shape
    D = C // num_heads
    scale = D ** -0.5

    def ln(v, w, b):
        mu = jnp.mean(v, axis=-1, keepdims=True)
        var = jnp.mean((v - mu) ** 2, axis=-1, keepdims=True)
        return (v - mu) / jnp.sqrt(var + 1e-5) * w + b

    xn = ln(x, p["ln1_w"][0], p["ln1_b"][0])
    qkv = xn @ p["wqkv"]                                      # (B, N, 3C)
    q = qkv[..., :C].reshape(B, N, num_heads, D).transpose(0, 2, 1, 3) * scale
    k = qkv[..., C:2 * C].reshape(B, N, num_heads, D).transpose(0, 2, 1, 3)
    v = qkv[..., 2 * C:].reshape(B, N, num_heads, D).transpose(0, 2, 1, 3)
    attn = jax.nn.softmax(q @ jnp.swapaxes(k, -2, -1), axis=-1)
    out = (attn @ v).transpose(0, 2, 1, 3).reshape(B, N, C)
    out = out @ p["wproj"] + p["bproj"][0]
    x = x + out
    xn2 = ln(x, p["ln2_w"][0], p["ln2_b"][0])
    h = jax.nn.gelu(xn2 @ p["w1"] + p["b1"][0], approximate=False)
    return x + (h @ p["w2"] + p["b2"][0])


# --------------------------------------------------------------------------
if __name__ == "__main__":
    B, N, dim = 2, 8, 32
    num_heads = 4
    mlp_ratio = 4.0
    hidden = int(dim * mlp_ratio)

    key = jax.random.PRNGKey(0)
    keys = jax.random.split(key, 8)
    f32 = jnp.float32

    params = {
        "ln1_w": jnp.ones((1, dim), f32),
        "ln1_b": jnp.zeros((1, dim), f32),
        # qkv: Linear(dim, 3*dim, bias=False); stored here as (in, out) = W.T
        "wqkv": 0.02 * jax.random.normal(keys[0], (dim, 3 * dim), f32),
        "wproj": 0.02 * jax.random.normal(keys[1], (dim, dim), f32),
        "bproj": 0.02 * jax.random.normal(keys[2], (1, dim), f32),
        "ln2_w": jnp.ones((1, dim), f32),
        "ln2_b": jnp.zeros((1, dim), f32),
        "w1": 0.02 * jax.random.normal(keys[3], (dim, hidden), f32),
        "b1": 0.02 * jax.random.normal(keys[4], (1, hidden), f32),
        "w2": 0.02 * jax.random.normal(keys[5], (hidden, dim), f32),
        "b2": 0.02 * jax.random.normal(keys[6], (1, dim), f32),
    }

    x = jax.random.normal(keys[7], (B, N, dim), f32)

    out = vit_block(x, params, num_heads)
    out = jax.block_until_ready(out)

    ref = ref_block(x, params, num_heads)
    # Tolerance covers bf16 MXU operands + EUP approx reciprocal in softmax
    # (errors ~1e-3 absolute on O(1) outputs); far below any structural bug.
    np.testing.assert_allclose(np.asarray(out), np.asarray(ref),
                               rtol=5e-3, atol=5e-3)

    print("KERNEL_OK")
</pallas_src>

<mosaic_0001>
module attributes {stable_mosaic.version = 11 : i64} {
  func.func @block_kernel(%arg0: i32, %arg1: memref<8x32xf32, #tpu.memory_space<vmem>>, %arg2: memref<1x32xf32, #tpu.memory_space<vmem>>, %arg3: memref<1x32xf32, #tpu.memory_space<vmem>>, %arg4: memref<32x96xbf16, #tpu.memory_space<vmem>>, %arg5: memref<32x32xbf16, #tpu.memory_space<vmem>>, %arg6: memref<1x32xf32, #tpu.memory_space<vmem>>, %arg7: memref<1x32xf32, #tpu.memory_space<vmem>>, %arg8: memref<1x32xf32, #tpu.memory_space<vmem>>, %arg9: memref<32x128xbf16, #tpu.memory_space<vmem>>, %arg10: memref<1x128xf32, #tpu.memory_space<vmem>>, %arg11: memref<128x32xbf16, #tpu.memory_space<vmem>>, %arg12: memref<1x32xf32, #tpu.memory_space<vmem>>, %arg13: memref<8x32xf32, #tpu.memory_space<vmem>>, %arg14: memref<8x32xf32, #tpu.memory_space<vmem>>) attributes {dimension_semantics = [#tpu.dimension_semantics<parallel>], iteration_bounds = array<i64: 2>, scalar_prefetch = 0 : i64, scratch_operands = 1 : i64, tpu.core_type = #tpu.core_type<tc>, window_params = [{transform_indices = @transform_0, window_bounds = array<i64: 8, 32>}, {pipeline_mode = #tpu.pipeline_mode<synchronous>, transform_indices = @transform_1, window_bounds = array<i64: 1, 32>}, {pipeline_mode = #tpu.pipeline_mode<synchronous>, transform_indices = @transform_2, window_bounds = array<i64: 1, 32>}, {pipeline_mode = #tpu.pipeline_mode<synchronous>, transform_indices = @transform_3, window_bounds = array<i64: 32, 96>}, {pipeline_mode = #tpu.pipeline_mode<synchronous>, transform_indices = @transform_4, window_bounds = array<i64: 32, 32>}, {pipeline_mode = #tpu.pipeline_mode<synchronous>, transform_indices = @transform_5, window_bounds = array<i64: 1, 32>}, {pipeline_mode = #tpu.pipeline_mode<synchronous>, transform_indices = @transform_6, window_bounds = array<i64: 1, 32>}, {pipeline_mode = #tpu.pipeline_mode<synchronous>, transform_indices = @transform_7, window_bounds = array<i64: 1, 32>}, {pipeline_mode = #tpu.pipeline_mode<synchronous>, transform_indices = @transform_8, window_bounds = array<i64: 32, 128>}, {pipeline_mode = #tpu.pipeline_mode<synchronous>, transform_indices = @transform_9, window_bounds = array<i64: 1, 128>}, {pipeline_mode = #tpu.pipeline_mode<synchronous>, transform_indices = @transform_10, window_bounds = array<i64: 128, 32>}, {pipeline_mode = #tpu.pipeline_mode<synchronous>, transform_indices = @transform_11, window_bounds = array<i64: 1, 32>}, {transform_indices = @transform_12, window_bounds = array<i64: 8, 32>}]} {
    %c0 = arith.constant 0 : index
    %c0_0 = arith.constant 0 : index
    %0 = vector.load %arg1[%c0, %c0_0] : memref<8x32xf32, #tpu.memory_space<vmem>>, vector<8x32xf32>
    %c0_1 = arith.constant 0 : index
    %c0_2 = arith.constant 0 : index
    %1 = vector.load %arg2[%c0_1, %c0_2] : memref<1x32xf32, #tpu.memory_space<vmem>>, vector<1x32xf32>
    %c0_3 = arith.constant 0 : index
    %c0_4 = arith.constant 0 : index
    %2 = vector.load %arg3[%c0_3, %c0_4] : memref<1x32xf32, #tpu.memory_space<vmem>>, vector<1x32xf32>
    %cst = arith.constant dense<0.000000e+00> : vector<8xf32>
    %3 = vector.multi_reduction <add>, %0, %cst [1] : vector<8x32xf32> to vector<8xf32>
    %4 = vector.shape_cast %3 : vector<8xf32> to vector<8x1xf32>
    %cst_5 = arith.constant 3.200000e+01 : f32
    %5 = vector.broadcast %cst_5 : f32 to vector<8x1xf32>
    %6 = arith.divf %4, %5 : vector<8x1xf32>
    %7 = vector.broadcast %6 : vector<8x1xf32> to vector<8x32xf32>
    %8 = arith.subf %0, %7 : vector<8x32xf32>
    %9 = arith.mulf %8, %8 : vector<8x32xf32>
    %cst_6 = arith.constant dense<0.000000e+00> : vector<8xf32>
    %10 = vector.multi_reduction <add>, %9, %cst_6 [1] : vector<8x32xf32> to vector<8xf32>
    %11 = vector.shape_cast %10 : vector<8xf32> to vector<8x1xf32>
    %cst_7 = arith.constant 3.200000e+01 : f32
    %12 = vector.broadcast %cst_7 : f32 to vector<8x1xf32>
    %13 = arith.divf %11, %12 : vector<8x1xf32>
    %cst_8 = arith.constant 9.99999974E-6 : f32
    %14 = vector.broadcast %cst_8 : f32 to vector<8x1xf32>
    %15 = arith.addf %13, %14 : vector<8x1xf32>
    %16 = math.rsqrt %15 : vector<8x1xf32>
    %17 = vector.broadcast %16 : vector<8x1xf32> to vector<8x32xf32>
    %18 = arith.mulf %8, %17 : vector<8x32xf32>
    %19 = vector.broadcast %1 : vector<1x32xf32> to vector<8x32xf32>
    %20 = arith.mulf %18, %19 : vector<8x32xf32>
    %21 = vector.broadcast %2 : vector<1x32xf32> to vector<8x32xf32>
    %22 = arith.addf %20, %21 : vector<8x32xf32>
    %23 = arith.truncf %22 : vector<8x32xf32> to vector<8x32xbf16>
    %c0_9 = arith.constant 0 : index
    %c0_10 = arith.constant 0 : index
    %24 = vector.load %arg4[%c0_9, %c0_10] : memref<32x96xbf16, #tpu.memory_space<vmem>>, vector<32x96xbf16>
    %cst_11 = arith.constant dense<0.000000e+00> : vector<8x96xf32>
    %25 = tpu.matmul %23, %24, %cst_11 {dimension_numbers = #tpu.dot_dimension_numbers<[1], [0], [0], [1], [0, 0, 1, 1], [], []>} : vector<8x32xbf16>, vector<32x96xbf16>, vector<8x96xf32> -> vector<8x96xf32>
    %26 = vector.extract_strided_slice %25 {offsets = [0, 0], sizes = [8, 8], strides = [1, 1]} : vector<8x96xf32> to vector<8x8xf32>
    %27 = vector.shape_cast %26 : vector<8x8xf32> to vector<1x8x8xf32>
    %28 = arith.truncf %27 : vector<1x8x8xf32> to vector<1x8x8xbf16>
    %29 = vector.extract_strided_slice %25 {offsets = [0, 32], sizes = [8, 8], strides = [1, 1]} : vector<8x96xf32> to vector<8x8xf32>
    %30 = vector.shape_cast %29 : vector<8x8xf32> to vector<1x8x8xf32>
    %31 = arith.truncf %30 : vector<1x8x8xf32> to vector<1x8x8xbf16>
    %32 = vector.extract_strided_slice %25 {offsets = [0, 64], sizes = [8, 8], strides = [1, 1]} : vector<8x96xf32> to vector<8x8xf32>
    %33 = vector.shape_cast %32 : vector<8x8xf32> to vector<1x8x8xf32>
    %34 = arith.truncf %33 : vector<1x8x8xf32> to vector<1x8x8xbf16>
    %cst_12 = arith.constant dense<0.000000e+00> : vector<1x8x8xf32>
    %35 = tpu.matmul %28, %31, %cst_12 {dimension_numbers = #tpu.dot_dimension_numbers<[2], [2], [1], [1], [0, 0, 0, 1, 1, 1], [0], [0]>} : vector<1x8x8xbf16>, vector<1x8x8xbf16>, vector<1x8x8xf32> -> vector<1x8x8xf32>
    %cst_13 = arith.constant dense<0xFF800000> : vector<1x8xf32>
    %36 = vector.multi_reduction <maximumf>, %35, %cst_13 [2] : vector<1x8x8xf32> to vector<1x8xf32>
    %37 = vector.shape_cast %36 : vector<1x8xf32> to vector<1x8x1xf32>
    %38 = vector.broadcast %37 : vector<1x8x1xf32> to vector<1x8x8xf32>
    %39 = arith.subf %35, %38 : vector<1x8x8xf32>
    %40 = math.exp %39 : vector<1x8x8xf32>
    %cst_14 = arith.constant dense<0.000000e+00> : vector<1x8xf32>
    %41 = vector.multi_reduction <add>, %40, %cst_14 [2] : vector<1x8x8xf32> to vector<1x8xf32>
    %42 = vector.shape_cast %41 : vector<1x8xf32> to vector<1x8x1xf32>
    %43 = tpu.reciprocal %42 {approx = true} : vector<1x8x1xf32> -> vector<1x8x1xf32>
    %44 = vector.broadcast %43 : vector<1x8x1xf32> to vector<1x8x8xf32>
    %45 = arith.mulf %40, %44 : vector<1x8x8xf32>
    %46 = arith.truncf %45 : vector<1x8x8xf32> to vector<1x8x8xbf16>
    %cst_15 = arith.constant dense<0.000000e+00> : vector<1x8x8xf32>
    %47 = tpu.matmul %46, %34, %cst_15 {dimension_numbers = #tpu.dot_dimension_numbers<[2], [1], [1], [2], [0, 0, 0, 1, 1, 2], [0], [0]>} : vector<1x8x8xbf16>, vector<1x8x8xbf16>, vector<1x8x8xf32> -> vector<1x8x8xf32>
    %48 = vector.shape_cast %47 : vector<1x8x8xf32> to vector<8x8xf32>
    %c0_16 = arith.constant 0 : index
    %c0_17 = arith.constant 0 : index
    %49 = vector.load %arg14[%c0_16, %c0_17] : memref<8x32xf32, #tpu.memory_space<vmem>>, vector<8x8xf32>
    tpu.vector_store %arg14[%c0_16, %c0_17], %48 {strides = array<i32>} : memref<8x32xf32, #tpu.memory_space<vmem>>, vector<8x8xf32>,
    %50 = vector.extract_strided_slice %25 {offsets = [0, 8], sizes = [8, 8], strides = [1, 1]} : vector<8x96xf32> to vector<8x8xf32>
    %51 = vector.shape_cast %50 : vector<8x8xf32> to vector<1x8x8xf32>
    %52 = arith.truncf %51 : vector<1x8x8xf32> to vector<1x8x8xbf16>
    %53 = vector.extract_strided_slice %25 {offsets = [0, 40], sizes = [8, 8], strides = [1, 1]} : vector<8x96xf32> to vector<8x8xf32>
    %54 = vector.shape_cast %53 : vector<8x8xf32> to vector<1x8x8xf32>
    %55 = arith.truncf %54 : vector<1x8x8xf32> to vector<1x8x8xbf16>
    %56 = vector.extract_strided_slice %25 {offsets = [0, 72], sizes = [8, 8], strides = [1, 1]} : vector<8x96xf32> to vector<8x8xf32>
    %57 = vector.shape_cast %56 : vector<8x8xf32> to vector<1x8x8xf32>
    %58 = arith.truncf %57 : vector<1x8x8xf32> to vector<1x8x8xbf16>
    %cst_18 = arith.constant dense<0.000000e+00> : vector<1x8x8xf32>
    %59 = tpu.matmul %52, %55, %cst_18 {dimension_numbers = #tpu.dot_dimension_numbers<[2], [2], [1], [1], [0, 0, 0, 1, 1, 1], [0], [0]>} : vector<1x8x8xbf16>, vector<1x8x8xbf16>, vector<1x8x8xf32> -> vector<1x8x8xf32>
    %cst_19 = arith.constant dense<0xFF800000> : vector<1x8xf32>
    %60 = vector.multi_reduction <maximumf>, %59, %cst_19 [2] : vector<1x8x8xf32> to vector<1x8xf32>
    %61 = vector.shape_cast %60 : vector<1x8xf32> to vector<1x8x1xf32>
    %62 = vector.broadcast %61 : vector<1x8x1xf32> to vector<1x8x8xf32>
    %63 = arith.subf %59, %62 : vector<1x8x8xf32>
    %64 = math.exp %63 : vector<1x8x8xf32>
    %cst_20 = arith.constant dense<0.000000e+00> : vector<1x8xf32>
    %65 = vector.multi_reduction <add>, %64, %cst_20 [2] : vector<1x8x8xf32> to vector<1x8xf32>
    %66 = vector.shape_cast %65 : vector<1x8xf32> to vector<1x8x1xf32>
    %67 = tpu.reciprocal %66 {approx = true} : vector<1x8x1xf32> -> vector<1x8x1xf32>
    %68 = vector.broadcast %67 : vector<1x8x1xf32> to vector<1x8x8xf32>
    %69 = arith.mulf %64, %68 : vector<1x8x8xf32>
    %70 = arith.truncf %69 : vector<1x8x8xf32> to vector<1x8x8xbf16>
    %cst_21 = arith.constant dense<0.000000e+00> : vector<1x8x8xf32>
    %71 = tpu.matmul %70, %58, %cst_21 {dimension_numbers = #tpu.dot_dimension_numbers<[2], [1], [1], [2], [0, 0, 0, 1, 1, 2], [0], [0]>} : vector<1x8x8xbf16>, vector<1x8x8xbf16>, vector<1x8x8xf32> -> vector<1x8x8xf32>
    %72 = vector.shape_cast %71 : vector<1x8x8xf32> to vector<8x8xf32>
    %c0_22 = arith.constant 0 : index
    %c8 = arith.constant 8 : index
    %73 = vector.load %arg14[%c0_22, %c8] : memref<8x32xf32, #tpu.memory_space<vmem>>, vector<8x8xf32>
    tpu.vector_store %arg14[%c0_22, %c8], %72 {strides = array<i32>} : memref<8x32xf32, #tpu.memory_space<vmem>>, vector<8x8xf32>,
    %74 = vector.extract_strided_slice %25 {offsets = [0, 16], sizes = [8, 8], strides = [1, 1]} : vector<8x96xf32> to vector<8x8xf32>
    %75 = vector.shape_cast %74 : vector<8x8xf32> to vector<1x8x8xf32>
    %76 = arith.truncf %75 : vector<1x8x8xf32> to vector<1x8x8xbf16>
    %77 = vector.extract_strided_slice %25 {offsets = [0, 48], sizes = [8, 8], strides = [1, 1]} : vector<8x96xf32> to vector<8x8xf32>
    %78 = vector.shape_cast %77 : vector<8x8xf32> to vector<1x8x8xf32>
    %79 = arith.truncf %78 : vector<1x8x8xf32> to vector<1x8x8xbf16>
    %80 = vector.extract_strided_slice %25 {offsets = [0, 80], sizes = [8, 8], strides = [1, 1]} : vector<8x96xf32> to vector<8x8xf32>
    %81 = vector.shape_cast %80 : vector<8x8xf32> to vector<1x8x8xf32>
    %82 = arith.truncf %81 : vector<1x8x8xf32> to vector<1x8x8xbf16>
    %cst_23 = arith.constant dense<0.000000e+00> : vector<1x8x8xf32>
    %83 = tpu.matmul %76, %79, %cst_23 {dimension_numbers = #tpu.dot_dimension_numbers<[2], [2], [1], [1], [0, 0, 0, 1, 1, 1], [0], [0]>} : vector<1x8x8xbf16>, vector<1x8x8xbf16>, vector<1x8x8xf32> -> vector<1x8x8xf32>
    %cst_24 = arith.constant dense<0xFF800000> : vector<1x8xf32>
    %84 = vector.multi_reduction <maximumf>, %83, %cst_24 [2] : vector<1x8x8xf32> to vector<1x8xf32>
    %85 = vector.shape_cast %84 : vector<1x8xf32> to vector<1x8x1xf32>
    %86 = vector.broadcast %85 : vector<1x8x1xf32> to vector<1x8x8xf32>
    %87 = arith.subf %83, %86 : vector<1x8x8xf32>
    %88 = math.exp %87 : vector<1x8x8xf32>
    %cst_25 = arith.constant dense<0.000000e+00> : vector<1x8xf32>
    %89 = vector.multi_reduction <add>, %88, %cst_25 [2] : vector<1x8x8xf32> to vector<1x8xf32>
    %90 = vector.shape_cast %89 : vector<1x8xf32> to vector<1x8x1xf32>
    %91 = tpu.reciprocal %90 {approx = true} : vector<1x8x1xf32> -> vector<1x8x1xf32>
    %92 = vector.broadcast %91 : vector<1x8x1xf32> to vector<1x8x8xf32>
    %93 = arith.mulf %88, %92 : vector<1x8x8xf32>
    %94 = arith.truncf %93 : vector<1x8x8xf32> to vector<1x8x8xbf16>
    %cst_26 = arith.constant dense<0.000000e+00> : vector<1x8x8xf32>
    %95 = tpu.matmul %94, %82, %cst_26 {dimension_numbers = #tpu.dot_dimension_numbers<[2], [1], [1], [2], [0, 0, 0, 1, 1, 2], [0], [0]>} : vector<1x8x8xbf16>, vector<1x8x8xbf16>, vector<1x8x8xf32> -> vector<1x8x8xf32>
    %96 = vector.shape_cast %95 : vector<1x8x8xf32> to vector<8x8xf32>
    %c0_27 = arith.constant 0 : index
    %c16 = arith.constant 16 : index
    %97 = vector.load %arg14[%c0_27, %c16] : memref<8x32xf32, #tpu.memory_space<vmem>>, vector<8x8xf32>
    tpu.vector_store %arg14[%c0_27, %c16], %96 {strides = array<i32>} : memref<8x32xf32, #tpu.memory_space<vmem>>, vector<8x8xf32>,
    %98 = vector.extract_strided_slice %25 {offsets = [0, 24], sizes = [8, 8], strides = [1, 1]} : vector<8x96xf32> to vector<8x8xf32>
    %99 = vector.shape_cast %98 : vector<8x8xf32> to vector<1x8x8xf32>
    %100 = arith.truncf %99 : vector<1x8x8xf32> to vector<1x8x8xbf16>
    %101 = vector.extract_strided_slice %25 {offsets = [0, 56], sizes = [8, 8], strides = [1, 1]} : vector<8x96xf32> to vector<8x8xf32>
    %102 = vector.shape_cast %101 : vector<8x8xf32> to vector<1x8x8xf32>
    %103 = arith.truncf %102 : vector<1x8x8xf32> to vector<1x8x8xbf16>
    %104 = vector.extract_strided_slice %25 {offsets = [0, 88], sizes = [8, 8], strides = [1, 1]} : vector<8x96xf32> to vector<8x8xf32>
    %105 = vector.shape_cast %104 : vector<8x8xf32> to vector<1x8x8xf32>
    %106 = arith.truncf %105 : vector<1x8x8xf32> to vector<1x8x8xbf16>
    %cst_28 = arith.constant dense<0.000000e+00> : vector<1x8x8xf32>
    %107 = tpu.matmul %100, %103, %cst_28 {dimension_numbers = #tpu.dot_dimension_numbers<[2], [2], [1], [1], [0, 0, 0, 1, 1, 1], [0], [0]>} : vector<1x8x8xbf16>, vector<1x8x8xbf16>, vector<1x8x8xf32> -> vector<1x8x8xf32>
    %cst_29 = arith.constant dense<0xFF800000> : vector<1x8xf32>
    %108 = vector.multi_reduction <maximumf>, %107, %cst_29 [2] : vector<1x8x8xf32> to vector<1x8xf32>
    %109 = vector.shape_cast %108 : vector<1x8xf32> to vector<1x8x1xf32>
    %110 = vector.broadcast %109 : vector<1x8x1xf32> to vector<1x8x8xf32>
    %111 = arith.subf %107, %110 : vector<1x8x8xf32>
    %112 = math.exp %111 : vector<1x8x8xf32>
    %cst_30 = arith.constant dense<0.000000e+00> : vector<1x8xf32>
    %113 = vector.multi_reduction <add>, %112, %cst_30 [2] : vector<1x8x8xf32> to vector<1x8xf32>
    %114 = vector.shape_cast %113 : vector<1x8xf32> to vector<1x8x1xf32>
    %115 = tpu.reciprocal %114 {approx = true} : vector<1x8x1xf32> -> vector<1x8x1xf32>
    %116 = vector.broadcast %115 : vector<1x8x1xf32> to vector<1x8x8xf32>
    %117 = arith.mulf %112, %116 : vector<1x8x8xf32>
    %118 = arith.truncf %117 : vector<1x8x8xf32> to vector<1x8x8xbf16>
    %cst_31 = arith.constant dense<0.000000e+00> : vector<1x8x8xf32>
    %119 = tpu.matmul %118, %106, %cst_31 {dimension_numbers = #tpu.dot_dimension_numbers<[2], [1], [1], [2], [0, 0, 0, 1, 1, 2], [0], [0]>} : vector<1x8x8xbf16>, vector<1x8x8xbf16>, vector<1x8x8xf32> -> vector<1x8x8xf32>
    %120 = vector.shape_cast %119 : vector<1x8x8xf32> to vector<8x8xf32>
    %c0_32 = arith.constant 0 : index
    %c24 = arith.constant 24 : index
    %121 = vector.load %arg14[%c0_32, %c24] : memref<8x32xf32, #tpu.memory_space<vmem>>, vector<8x8xf32>
    tpu.vector_store %arg14[%c0_32, %c24], %120 {strides = array<i32>} : memref<8x32xf32, #tpu.memory_space<vmem>>, vector<8x8xf32>,
    %c0_33 = arith.constant 0 : index
    %c0_34 = arith.constant 0 : index
    %122 = vector.load %arg14[%c0_33, %c0_34] : memref<8x32xf32, #tpu.memory_space<vmem>>, vector<8x32xf32>
    %123 = arith.truncf %122 : vector<8x32xf32> to vector<8x32xbf16>
    %c0_35 = arith.constant 0 : index
    %c0_36 = arith.constant 0 : index
    %124 = vector.load %arg5[%c0_35, %c0_36] : memref<32x32xbf16, #tpu.memory_space<vmem>>, vector<32x32xbf16>
    %cst_37 = arith.constant dense<0.000000e+00> : vector<8x32xf32>
    %125 = tpu.matmul %123, %124, %cst_37 {dimension_numbers = #tpu.dot_dimension_numbers<[1], [0], [0], [1], [0, 0, 1, 1], [], []>} : vector<8x32xbf16>, vector<32x32xbf16>, vector<8x32xf32> -> vector<8x32xf32>
    %126 = arith.addf %0, %125 : vector<8x32xf32>
    %c0_38 = arith.constant 0 : index
    %c0_39 = arith.constant 0 : index
    %127 = vector.load %arg6[%c0_38, %c0_39] : memref<1x32xf32, #tpu.memory_space<vmem>>, vector<1x32xf32>
    %128 = vector.broadcast %127 : vector<1x32xf32> to vector<8x32xf32>
    %129 = arith.addf %126, %128 : vector<8x32xf32>
    %c0_40 = arith.constant 0 : index
    %c0_41 = arith.constant 0 : index
    %130 = vector.load %arg7[%c0_40, %c0_41] : memref<1x32xf32, #tpu.memory_space<vmem>>, vector<1x32xf32>
    %c0_42 = arith.constant 0 : index
    %c0_43 = arith.constant 0 : index
    %131 = vector.load %arg8[%c0_42, %c0_43] : memref<1x32xf32, #tpu.memory_space<vmem>>, vector<1x32xf32>
    %cst_44 = arith.constant dense<0.000000e+00> : vector<8xf32>
    %132 = vector.multi_reduction <add>, %129, %cst_44 [1] : vector<8x32xf32> to vector<8xf32>
    %133 = vector.shape_cast %132 : vector<8xf32> to vector<8x1xf32>
    %cst_45 = arith.constant 3.200000e+01 : f32
    %134 = vector.broadcast %cst_45 : f32 to vector<8x1xf32>
    %135 = arith.divf %133, %134 : vector<8x1xf32>
    %136 = vector.broadcast %135 : vector<8x1xf32> to vector<8x32xf32>
    %137 = arith.subf %129, %136 : vector<8x32xf32>
    %138 = arith.mulf %137, %137 : vector<8x32xf32>
    %cst_46 = arith.constant dense<0.000000e+00> : vector<8xf32>
    %139 = vector.multi_reduction <add>, %138, %cst_46 [1] : vector<8x32xf32> to vector<8xf32>
    %140 = vector.shape_cast %139 : vector<8xf32> to vector<8x1xf32>
    %cst_47 = arith.constant 3.200000e+01 : f32
    %141 = vector.broadcast %cst_47 : f32 to vector<8x1xf32>
    %142 = arith.divf %140, %141 : vector<8x1xf32>
    %cst_48 = arith.constant 9.99999974E-6 : f32
    %143 = vector.broadcast %cst_48 : f32 to vector<8x1xf32>
    %144 = arith.addf %142, %143 : vector<8x1xf32>
    %145 = math.rsqrt %144 : vector<8x1xf32>
    %146 = vector.broadcast %145 : vector<8x1xf32> to vector<8x32xf32>
    %147 = arith.mulf %137, %146 : vector<8x32xf32>
    %148 = vector.broadcast %130 : vector<1x32xf32> to vector<8x32xf32>
    %149 = arith.mulf %147, %148 : vector<8x32xf32>
    %150 = vector.broadcast %131 : vector<1x32xf32> to vector<8x32xf32>
    %151 = arith.addf %149, %150 : vector<8x32xf32>
    %152 = arith.truncf %151 : vector<8x32xf32> to vector<8x32xbf16>
    %c0_49 = arith.constant 0 : index
    %c0_50 = arith.constant 0 : index
    %153 = vector.load %arg9[%c0_49, %c0_50] : memref<32x128xbf16, #tpu.memory_space<vmem>>, vector<32x128xbf16>
    %cst_51 = arith.constant dense<0.000000e+00> : vector<8x128xf32>
    %154 = tpu.matmul %152, %153, %cst_51 {dimension_numbers = #tpu.dot_dimension_numbers<[1], [0], [0], [1], [0, 0, 1, 1], [], []>} : vector<8x32xbf16>, vector<32x128xbf16>, vector<8x128xf32> -> vector<8x128xf32>
    %c0_52 = arith.constant 0 : index
    %c0_53 = arith.constant 0 : index
    %155 = vector.load %arg10[%c0_52, %c0_53] : memref<1x128xf32, #tpu.memory_space<vmem>>, vector<1x128xf32>
    %156 = vector.broadcast %155 : vector<1x128xf32> to vector<8x128xf32>
    %157 = arith.addf %154, %156 : vector<8x128xf32>
    %cst_54 = arith.constant 5.000000e-01 : f32
    %158 = vector.broadcast %cst_54 : f32 to vector<8x128xf32>
    %159 = arith.mulf %158, %157 : vector<8x128xf32>
    %cst_55 = arith.constant 0.707106769 : f32
    %160 = vector.broadcast %cst_55 : f32 to vector<8x128xf32>
    %161 = arith.mulf %157, %160 : vector<8x128xf32>
    %cst_56 = arith.constant -4.000000e+00 : f32
    %cst_57 = arith.constant 4.000000e+00 : f32
    %162 = vector.broadcast %cst_56 : f32 to vector<8x128xf32>
    %163 = arith.maximumf %162, %161 : vector<8x128xf32>
    %164 = vector.broadcast %cst_57 : f32 to vector<8x128xf32>
    %165 = arith.minimumf %164, %163 : vector<8x128xf32>
    %166 = arith.mulf %165, %165 : vector<8x128xf32>
    %cst_58 = arith.constant -2.72614237E-10 : f32
    %167 = vector.broadcast %cst_58 : f32 to vector<8x128xf32>
    %168 = arith.mulf %167, %166 : vector<8x128xf32>
    %cst_59 = arith.constant 2.77068146E-8 : f32
    %169 = vector.broadcast %cst_59 : f32 to vector<8x128xf32>
    %170 = arith.addf %168, %169 : vector<8x128xf32>
    %171 = arith.mulf %170, %166 : vector<8x128xf32>
    %cst_60 = arith.constant -2.10102394E-6 : f32
    %172 = vector.broadcast %cst_60 : f32 to vector<8x128xf32>
    %173 = arith.addf %171, %172 : vector<8x128xf32>
    %174 = arith.mulf %173, %166 : vector<8x128xf32>
    %cst_61 = arith.constant -5.69250624E-5 : f32
    %175 = vector.broadcast %cst_61 : f32 to vector<8x128xf32>
    %176 = arith.addf %174, %175 : vector<8x128xf32>
    %177 = arith.mulf %176, %166 : vector<8x128xf32>
    %cst_62 = arith.constant -7.34990637E-4 : f32
    %178 = vector.broadcast %cst_62 : f32 to vector<8x128xf32>
    %179 = arith.addf %177, %178 : vector<8x128xf32>
    %180 = arith.mulf %179, %166 : vector<8x128xf32>
    %cst_63 = arith.constant -2.954600e-03 : f32
    %181 = vector.broadcast %cst_63 : f32 to vector<8x128xf32>
    %182 = arith.addf %180, %181 : vector<8x128xf32>
    %183 = arith.mulf %182, %166 : vector<8x128xf32>
    %cst_64 = arith.constant -0.0160960332 : f32
    %184 = vector.broadcast %cst_64 : f32 to vector<8x128xf32>
    %185 = arith.addf %183, %184 : vector<8x128xf32>
    %186 = arith.mulf %185, %165 : vector<8x128xf32>
    %cst_65 = arith.constant -1.45660715E-5 : f32
    %187 = vector.broadcast %cst_65 : f32 to vector<8x128xf32>
    %188 = arith.mulf %187, %166 : vector<8x128xf32>
    %cst_66 = arith.constant -2.13374049E-4 : f32
    %189 = vector.broadcast %cst_66 : f32 to vector<8x128xf32>
    %190 = arith.addf %188, %189 : vector<8x128xf32>
    %191 = arith.mulf %190, %166 : vector<8x128xf32>
    %cst_67 = arith.constant -0.00168282702 : f32
    %192 = vector.broadcast %cst_67 : f32 to vector<8x128xf32>
    %193 = arith.addf %191, %192 : vector<8x128xf32>
    %194 = arith.mulf %193, %166 : vector<8x128xf32>
    %cst_68 = arith.constant -0.00737332925 : f32
    %195 = vector.broadcast %cst_68 : f32 to vector<8x128xf32>
    %196 = arith.addf %194, %195 : vector<8x128xf32>
    %197 = arith.mulf %196, %166 : vector<8x128xf32>
    %cst_69 = arith.constant -0.0142647391 : f32
    %198 = vector.broadcast %cst_69 : f32 to vector<8x128xf32>
    %199 = arith.addf %197, %198 : vector<8x128xf32>
    %200 = arith.divf %186, %199 : vector<8x128xf32>
    %cst_70 = arith.constant 1.000000e+00 : f32
    %201 = vector.broadcast %cst_70 : f32 to vector<8x128xf32>
    %202 = arith.addf %201, %200 : vector<8x128xf32>
    %203 = arith.mulf %159, %202 : vector<8x128xf32>
    %204 = arith.truncf %203 : vector<8x128xf32> to vector<8x128xbf16>
    %c0_71 = arith.constant 0 : index
    %c0_72 = arith.constant 0 : index
    %205 = vector.load %arg11[%c0_71, %c0_72] : memref<128x32xbf16, #tpu.memory_space<vmem>>, vector<128x32xbf16>
    %cst_73 = arith.constant dense<0.000000e+00> : vector<8x32xf32>
    %206 = tpu.matmul %204, %205, %cst_73 {dimension_numbers = #tpu.dot_dimension_numbers<[1], [0], [0], [1], [0, 0, 1, 1], [], []>} : vector<8x128xbf16>, vector<128x32xbf16>, vector<8x32xf32> -> vector<8x32xf32>
    %c0_74 = arith.constant 0 : index
    %c0_75 = arith.constant 0 : index
    %207 = vector.load %arg12[%c0_74, %c0_75] : memref<1x32xf32, #tpu.memory_space<vmem>>, vector<1x32xf32>
    %208 = vector.broadcast %207 : vector<1x32xf32> to vector<8x32xf32>
    %209 = arith.addf %206, %208 : vector<8x32xf32>
    %210 = arith.addf %129, %209 : vector<8x32xf32>
    %c0_76 = arith.constant 0 : index
    %c0_77 = arith.constant 0 : index
    %211 = vector.load %arg13[%c0_76, %c0_77] : memref<8x32xf32, #tpu.memory_space<vmem>>, vector<8x32xf32>
    tpu.vector_store %arg13[%c0_76, %c0_77], %210 {strides = array<i32>} : memref<8x32xf32, #tpu.memory_space<vmem>>, vector<8x32xf32>,
    return
  }
  func.func @transform_0(%arg0: i32) -> (i32, i32) {
    %c0_i32 = arith.constant 0 : i32
    %c0_i32_0 = arith.constant 0 : i32
    return %arg0, %c0_i32 : i32, i32
  }
  func.func @transform_1(%arg0: i32) -> (i32, i32) {
    %c0_i32 = arith.constant 0 : i32
    %c0_i32_0 = arith.constant 0 : i32
    %c0_i32_1 = arith.constant 0 : i32
    return %c0_i32, %c0_i32_0 : i32, i32
  }
  func.func @transform_2(%arg0: i32) -> (i32, i32) {
    %c0_i32 = arith.constant 0 : i32
    %c0_i32_0 = arith.constant 0 : i32
    %c0_i32_1 = arith.constant 0 : i32
    return %c0_i32, %c0_i32_0 : i32, i32
  }
  func.func @transform_3(%arg0: i32) -> (i32, i32) {
    %c0_i32 = arith.constant 0 : i32
    %c0_i32_0 = arith.constant 0 : i32
    %c0_i32_1 = arith.constant 0 : i32
    return %c0_i32, %c0_i32_0 : i32, i32
  }
  func.func @transform_4(%arg0: i32) -> (i32, i32) {
    %c0_i32 = arith.constant 0 : i32
    %c0_i32_0 = arith.constant 0 : i32
    %c0_i32_1 = arith.constant 0 : i32
    return %c0_i32, %c0_i32_0 : i32, i32
  }
  func.func @transform_5(%arg0: i32) -> (i32, i32) {
    %c0_i32 = arith.constant 0 : i32
    %c0_i32_0 = arith.constant 0 : i32
    %c0_i32_1 = arith.constant 0 : i32
    return %c0_i32, %c0_i32_0 : i32, i32
  }
  func.func @transform_6(%arg0: i32) -> (i32, i32) {
    %c0_i32 = arith.constant 0 : i32
    %c0_i32_0 = arith.constant 0 : i32
    %c0_i32_1 = arith.constant 0 : i32
    return %c0_i32, %c0_i32_0 : i32, i32
  }
  func.func @transform_7(%arg0: i32) -> (i32, i32) {
    %c0_i32 = arith.constant 0 : i32
    %c0_i32_0 = arith.constant 0 : i32
    %c0_i32_1 = arith.constant 0 : i32
    return %c0_i32, %c0_i32_0 : i32, i32
  }
  func.func @transform_8(%arg0: i32) -> (i32, i32) {
    %c0_i32 = arith.constant 0 : i32
    %c0_i32_0 = arith.constant 0 : i32
    %c0_i32_1 = arith.constant 0 : i32
    return %c0_i32, %c0_i32_0 : i32, i32
  }
  func.func @transform_9(%arg0: i32) -> (i32, i32) {
    %c0_i32 = arith.constant 0 : i32
    %c0_i32_0 = arith.constant 0 : i32
    %c0_i32_1 = arith.constant 0 : i32
    return %c0_i32, %c0_i32_0 : i32, i32
  }
  func.func @transform_10(%arg0: i32) -> (i32, i32) {
    %c0_i32 = arith.constant 0 : i32
    %c0_i32_0 = arith.constant 0 : i32
    %c0_i32_1 = arith.constant 0 : i32
    return %c0_i32, %c0_i32_0 : i32, i32
  }
  func.func @transform_11(%arg0: i32) -> (i32, i32) {
    %c0_i32 = arith.constant 0 : i32
    %c0_i32_0 = arith.constant 0 : i32
    %c0_i32_1 = arith.constant 0 : i32
    return %c0_i32, %c0_i32_0 : i32, i32
  }
  func.func @transform_12(%arg0: i32) -> (i32, i32) {
    %c0_i32 = arith.constant 0 : i32
    %c0_i32_0 = arith.constant 0 : i32
    return %arg0, %c0_i32 : i32, i32
  }
}

</mosaic_0001>

<llo_original>
// kernel: tpu_custom_call.1
$region0: #{tpu_custom_call.1}
  #allocation0 [shape = 'u32[]', space=smem, size = 0x4, offset = 0x4, fixed_abs, tag = 'smem constant byte address 0x4 - core index']
  #allocation1 [shape = 'u32[144,128]{1,0:T(1,128)}', space=vmem, size = 0x12000, scoped, tag = 'internal scratch']
  #allocation2 [shape = 'f32[8,32]{1,0:T(8,128)}', space=vmem, size = 0x1000, scoped, tag = 'scratch operand']
  %s0 = inlined_call_operand.hbm [shape: f32[16,32], index: 0, kind: input, shape index: {}]
  %s1 = inlined_call_operand.hbm [shape: f32[1,32], index: 1, kind: input, shape index: {}]
  %s2 = inlined_call_operand.hbm [shape: f32[1,32], index: 2, kind: input, shape index: {}]
  %s3 = inlined_call_operand.hbm [shape: bf16[32,96], index: 3, kind: input, shape index: {}]
  %s4 = inlined_call_operand.hbm [shape: bf16[32,32], index: 4, kind: input, shape index: {}]
  %s5 = inlined_call_operand.hbm [shape: f32[1,32], index: 5, kind: input, shape index: {}]
  %s6 = inlined_call_operand.hbm [shape: f32[1,32], index: 6, kind: input, shape index: {}]
  %s7 = inlined_call_operand.hbm [shape: f32[1,32], index: 7, kind: input, shape index: {}]
  %s8 = inlined_call_operand.hbm [shape: bf16[32,128], index: 8, kind: input, shape index: {}]
  %s9 = inlined_call_operand.hbm [shape: f32[1,128], index: 9, kind: input, shape index: {}]
  %s10 = inlined_call_operand.hbm [shape: bf16[128,32], index: 10, kind: input, shape index: {}]
  %s11 = inlined_call_operand.hbm [shape: f32[1,32], index: 11, kind: input, shape index: {}]
  %s12 = inlined_call_operand.hbm [shape: f32[16,32], index: 12, kind: output, shape index: {}]
  %s13 = sld [smem:[#allocation0]]
  $region129: #{tpu_custom_call.1} parent=0
    _
  %s15 = ssub.s32 1, %s13
  %s16 = scalar_select 0, %s15, %s13
  $region1: #{tpu_custom_call.1} parent=0
    #allocation3 [shape = 'u8[8192]{0}', space=vmem, size = 0x2000, scoped, tag = 'input window, operand 0']
    #allocation4 [shape = 's32[2]{0}', space=sflag, size = 0x8, scoped, tag = 'scoped memory for tpu_custom_call.1']
    #allocation5 [shape = 's32[2]{0}', space=sflag, size = 0x8, scoped, tag = 'scoped memory for tpu_custom_call.1']
    #allocation6 [shape = 'u8[512]{0}', space=vmem, size = 0x400, scoped, tag = 'input window, operand 1, single buffered']
    #allocation7 [shape = 's32[1]{0}', space=sflag, size = 0x4, scoped, tag = 'scoped memory for tpu_custom_call.1']
    #allocation8 [shape = 'u8[512]{0}', space=vmem, size = 0x400, scoped, tag = 'input window, operand 2, single buffered']
    #allocation9 [shape = 'u8[8192]{0}', space=vmem, size = 0x2000, scoped, tag = 'input window, operand 3, single buffered']
    #allocation10 [shape = 's32[1]{0}', space=sflag, size = 0x4, scoped, tag = 'scoped memory for tpu_custom_call.1']
    #allocation11 [shape = 'u8[8192]{0}', space=vmem, size = 0x2000, scoped, tag = 'input window, operand 4, single buffered']
    #allocation12 [shape = 'u8[512]{0}', space=vmem, size = 0x400, scoped, tag = 'input window, operand 5, single buffered']
    #allocation13 [shape = 's32[1]{0}', space=sflag, size = 0x4, scoped, tag = 'scoped memory for tpu_custom_call.1']
    #allocation14 [shape = 'u8[512]{0}', space=vmem, size = 0x400, scoped, tag = 'input window, operand 6, single buffered']
    #allocation15 [shape = 'u8[512]{0}', space=vmem, size = 0x400, scoped, tag = 'input window, operand 7, single buffered']
    #allocation16 [shape = 's32[1]{0}', space=sflag, size = 0x4, scoped, tag = 'scoped memory for tpu_custom_call.1']
    #allocation17 [shape = 'u8[8192]{0}', space=vmem, size = 0x2000, scoped, tag = 'input window, operand 8, single buffered']
    #allocation18 [shape = 'u8[512]{0}', space=vmem, size = 0x400, scoped, tag = 'input window, operand 9, single buffered']
    #allocation19 [shape = 's32[1]{0}', space=sflag, size = 0x4, scoped, tag = 'scoped memory for tpu_custom_call.1']
    #allocation20 [shape = 'u8[32768]{0}', space=vmem, size = 0x8000, scoped, tag = 'input window, operand 10, single buffered']
    #allocation21 [shape = 'u8[512]{0}', space=vmem, size = 0x400, scoped, tag = 'input window, operand 11, single buffered']
    #allocation22 [shape = 's32[1]{0}', space=sflag, size = 0x4, scoped, tag = 'scoped memory for tpu_custom_call.1']
    #allocation23 [shape = 'u8[8192]{0}', space=vmem, size = 0x2000, scoped, tag = 'output window, operand 0']
    %17 = vsyncpa [#allocation4], 0
    %s18 = scalar_lea.sflag [#allocation4], 1
    %19 = vsyncpa %s18, 0
    %20 = vsyncpa [#allocation7], 0
    %21 = vsyncpa [#allocation10], 0
    %22 = vsyncpa [#allocation13], 0
    %23 = vsyncpa [#allocation16], 0
    %24 = vsyncpa [#allocation19], 0
    %25 = vsyncpa [#allocation22], 0
    %26 = vsyncpa [#allocation5], 0
    %s27 = scalar_lea.sflag [#allocation5], 1
    %28 = vsyncpa %s27, 0
    loop: start=0, step=1, limit=4
    $region2: #{tpu_custom_call.1} parent=1 // loop_pre_header
      _
    $region3: #{tpu_custom_call.1} parent=1 // loop_header
      %s30 = sphi 0, %s34
      %p31 = scmp.ge.s32.totalorder %s30, 4
      %s40 = sphi 0, %s42
      %s43 = sphi 0, %s40
      %s44 = sphi 0, %s43
      %s60 = sphi 0, %s44
      %s64 = sphi 0, %s64
      %s66 = sphi 0, %s64
      %s67 = sphi 0, %s66
      %s81 = sphi 0, %s67
      %s85 = sphi 0, %s85
      %s87 = sphi 0, %s85
      %s88 = sphi 0, %s87
      %s102 = sphi 0, %s88
      %s106 = sphi 0, %s106
      %s108 = sphi 0, %s106
      %s109 = sphi 0, %s108
      %s123 = sphi 0, %s109
      %s127 = sphi 0, %s127
      %s129 = sphi 0, %s127
      %s130 = sphi 0, %s129
      %s144 = sphi 0, %s130
      %s148 = sphi 0, %s148
      %s150 = sphi 0, %s148
      %s151 = sphi 0, %s150
      %s165 = sphi 0, %s151
      %s169 = sphi 0, %s169
      %s171 = sphi 0, %s169
      %s172 = sphi 0, %s171
      %s186 = sphi 0, %s172
      %s190 = sphi 0, %s190
      %s192 = sphi 0, %s190
      %s193 = sphi 0, %s192
      %s207 = sphi 0, %s193
      %s211 = sphi 0, %s211
      %s213 = sphi 0, %s211
      %s214 = sphi 0, %s213
      %s228 = sphi 0, %s214
      %s232 = sphi 0, %s232
      %s234 = sphi 0, %s232
      %s235 = sphi 0, %s234
      %s249 = sphi 0, %s235
      %s253 = sphi 0, %s253
      %s255 = sphi 0, %s253
      %s256 = sphi 0, %s255
      %s270 = sphi 0, %s256
      %s274 = sphi 0, %s274
      %s276 = sphi 0, %s274
      %s277 = sphi 0, %s276
      %s291 = sphi 0, %s277
      %s297 = sphi 0, %s299
      %s300 = sphi 0, %s297
      %s301 = sphi 0, %s300
      %s317 = sphi 0, %s301
    $region4: #{tpu_custom_call.1} parent=1 // loop_header_branch
      %33 = sbr.rel (%p31) target = $region8
    $region5: #{tpu_custom_call.1} parent=1 // loop_body
      %s35 = ssub.s32 %s30, 1
      %s36 = ssub.s32 %s30, 2
      %s37 = sadd.s32 %s30, 1
      %s38 = ssub.s32 %s30, %s37
      %p39 = scmp.eq.s32.totalorder %s38, 0
      %s41 = sadd.s32 %s40, 1
      %s42 = scalar_select %p39, %s40, %s41
      %p45 = pneg %p39
      %p46 = scmp.eq.s32.totalorder %s30, 1
      %p47 = por %p45, %p46
      %p48 = scmp.ne.s32.totalorder %s40, %s43
      %p49 = scmp.eq.s32.totalorder %s30, 0
      %p50 = por %p48, %p49
      %p51 = scmp.ne.s32.totalorder %s40, %s43
      %p52 = scmp.eq.s32.totalorder %s35, 1
      %p53 = por %p51, %p52
      %p54 = scmp.ne.s32.totalorder %s43, %s44
      %p55 = scmp.eq.s32.totalorder %s35, 0
      %p56 = por %p54, %p55
      %p57 = scmp.ne.s32.totalorder %s43, %s44
      %p58 = scmp.eq.s32.totalorder %s36, 1
      %p59 = por %p57, %p58
      %p61 = scmp.ne.s32.totalorder %s44, %s60
      %p62 = scmp.eq.s32.totalorder %s36, 0
      %p63 = por %p61, %p62
      %s65 = sadd.s32 %s64, 1
      %p68 = scmp.eq.s32.totalorder %s30, 1
      %p69 = scmp.ne.s32.totalorder %s64, %s66
      %p70 = scmp.eq.s32.totalorder %s30, 0
      %p71 = por %p69, %p70
      %p72 = scmp.ne.s32.totalorder %s64, %s66
      %p73 = scmp.eq.s32.totalorder %s35, 1
      %p74 = por %p72, %p73
      %p75 = scmp.ne.s32.totalorder %s66, %s67
      %p76 = scmp.eq.s32.totalorder %s35, 0
      %p77 = por %p75, %p76
      %p78 = scmp.ne.s32.totalorder %s66, %s67
      %p79 = scmp.eq.s32.totalorder %s36, 1
      %p80 = por %p78, %p79
      %p82 = scmp.ne.s32.totalorder %s67, %s81
      %p83 = scmp.eq.s32.totalorder %s36, 0
      %p84 = por %p82, %p83
      %s86 = sadd.s32 %s85, 1
      %p89 = scmp.eq.s32.totalorder %s30, 1
      %p90 = scmp.ne.s32.totalorder %s85, %s87
      %p91 = scmp.eq.s32.totalorder %s30, 0
      %p92 = por %p90, %p91
      %p93 = scmp.ne.s32.totalorder %s85, %s87
      %p94 = scmp.eq.s32.totalorder %s35, 1
      %p95 = por %p93, %p94
      %p96 = scmp.ne.s32.totalorder %s87, %s88
      %p97 = scmp.eq.s32.totalorder %s35, 0
      %p98 = por %p96, %p97
      %p99 = scmp.ne.s32.totalorder %s87, %s88
      %p100 = scmp.eq.s32.totalorder %s36, 1
      %p101 = por %p99, %p100
      %p103 = scmp.ne.s32.totalorder %s88, %s102
      %p104 = scmp.eq.s32.totalorder %s36, 0
      %p105 = por %p103, %p104
      %s107 = sadd.s32 %s106, 1
      %p110 = scmp.eq.s32.totalorder %s30, 1
      %p111 = scmp.ne.s32.totalorder %s106, %s108
      %p112 = scmp.eq.s32.totalorder %s30, 0
      %p113 = por %p111, %p112
      %p114 = scmp.ne.s32.totalorder %s106, %s108
      %p115 = scmp.eq.s32.totalorder %s35, 1
      %p116 = por %p114, %p115
      %p117 = scmp.ne.s32.totalorder %s108, %s109
      %p118 = scmp.eq.s32.totalorder %s35, 0
      %p119 = por %p117, %p118
      %p120 = scmp.ne.s32.totalorder %s108, %s109
      %p121 = scmp.eq.s32.totalorder %s36, 1
      %p122 = por %p120, %p121
      %p124 = scmp.ne.s32.totalorder %s109, %s123
      %p125 = scmp.eq.s32.totalorder %s36, 0
      %p126 = por %p124, %p125
      %s128 = sadd.s32 %s127, 1
      %p131 = scmp.eq.s32.totalorder %s30, 1
      %p132 = scmp.ne.s32.totalorder %s127, %s129
      %p133 = scmp.eq.s32.totalorder %s30, 0
      %p134 = por %p132, %p133
      %p135 = scmp.ne.s32.totalorder %s127, %s129
      %p136 = scmp.eq.s32.totalorder %s35, 1
      %p137 = por %p135, %p136
      %p138 = scmp.ne.s32.totalorder %s129, %s130
      %p139 = scmp.eq.s32.totalorder %s35, 0
      %p140 = por %p138, %p139
      %p141 = scmp.ne.s32.totalorder %s129, %s130
      %p142 = scmp.eq.s32.totalorder %s36, 1
      %p143 = por %p141, %p142
      %p145 = scmp.ne.s32.totalorder %s130, %s144
      %p146 = scmp.eq.s32.totalorder %s36, 0
      %p147 = por %p145, %p146
      %s149 = sadd.s32 %s148, 1
      %p152 = scmp.eq.s32.totalorder %s30, 1
      %p153 = scmp.ne.s32.totalorder %s148, %s150
      %p154 = scmp.eq.s32.totalorder %s30, 0
      %p155 = por %p153, %p154
      %p156 = scmp.ne.s32.totalorder %s148, %s150
      %p157 = scmp.eq.s32.totalorder %s35, 1
      %p158 = por %p156, %p157
      %p159 = scmp.ne.s32.totalorder %s150, %s151
      %p160 = scmp.eq.s32.totalorder %s35, 0
      %p161 = por %p159, %p160
      %p162 = scmp.ne.s32.totalorder %s150, %s151
      %p163 = scmp.eq.s32.totalorder %s36, 1
      %p164 = por %p162, %p163
      %p166 = scmp.ne.s32.totalorder %s151, %s165
      %p167 = scmp.eq.s32.totalorder %s36, 0
      %p168 = por %p166, %p167
      %s170 = sadd.s32 %s169, 1
      %p173 = scmp.eq.s32.totalorder %s30, 1
      %p174 = scmp.ne.s32.totalorder %s169, %s171
      %p175 = scmp.eq.s32.totalorder %s30, 0
      %p176 = por %p174, %p175
      %p177 = scmp.ne.s32.totalorder %s169, %s171
      %p178 = scmp.eq.s32.totalorder %s35, 1
      %p179 = por %p177, %p178
      %p180 = scmp.ne.s32.totalorder %s171, %s172
      %p181 = scmp.eq.s32.totalorder %s35, 0
      %p182 = por %p180, %p181
      %p183 = scmp.ne.s32.totalorder %s171, %s172
      %p184 = scmp.eq.s32.totalorder %s36, 1
      %p185 = por %p183, %p184
      %p187 = scmp.ne.s32.totalorder %s172, %s186
      %p188 = scmp.eq.s32.totalorder %s36, 0
      %p189 = por %p187, %p188
      %s191 = sadd.s32 %s190, 1
      %p194 = scmp.eq.s32.totalorder %s30, 1
      %p195 = scmp.ne.s32.totalorder %s190, %s192
      %p196 = scmp.eq.s32.totalorder %s30, 0
      %p197 = por %p195, %p196
      %p198 = scmp.ne.s32.totalorder %s190, %s192
      %p199 = scmp.eq.s32.totalorder %s35, 1
      %p200 = por %p198, %p199
      %p201 = scmp.ne.s32.totalorder %s192, %s193
      %p202 = scmp.eq.s32.totalorder %s35, 0
      %p203 = por %p201, %p202
      %p204 = scmp.ne.s32.totalorder %s192, %s193
      %p205 = scmp.eq.s32.totalorder %s36, 1
      %p206 = por %p204, %p205
      %p208 = scmp.ne.s32.totalorder %s193, %s207
      %p209 = scmp.eq.s32.totalorder %s36, 0
      %p210 = por %p208, %p209
      %s212 = sadd.s32 %s211, 1
      %p215 = scmp.eq.s32.totalorder %s30, 1
      %p216 = scmp.ne.s32.totalorder %s211, %s213
      %p217 = scmp.eq.s32.totalorder %s30, 0
      %p218 = por %p216, %p217
      %p219 = scmp.ne.s32.totalorder %s211, %s213
      %p220 = scmp.eq.s32.totalorder %s35, 1
      %p221 = por %p219, %p220
      %p222 = scmp.ne.s32.totalorder %s213, %s214
      %p223 = scmp.eq.s32.totalorder %s35, 0
      %p224 = por %p222, %p223
      %p225 = scmp.ne.s32.totalorder %s213, %s214
      %p226 = scmp.eq.s32.totalorder %s36, 1
      %p227 = por %p225, %p226
      %p229 = scmp.ne.s32.totalorder %s214, %s228
      %p230 = scmp.eq.s32.totalorder %s36, 0
      %p231 = por %p229, %p230
      %s233 = sadd.s32 %s232, 1
      %p236 = scmp.eq.s32.totalorder %s30, 1
      %p237 = scmp.ne.s32.totalorder %s232, %s234
      %p238 = scmp.eq.s32.totalorder %s30, 0
      %p239 = por %p237, %p238
      %p240 = scmp.ne.s32.totalorder %s232, %s234
      %p241 = scmp.eq.s32.totalorder %s35, 1
      %p242 = por %p240, %p241
      %p243 = scmp.ne.s32.totalorder %s234, %s235
      %p244 = scmp.eq.s32.totalorder %s35, 0
      %p245 = por %p243, %p244
      %p246 = scmp.ne.s32.totalorder %s234, %s235
      %p247 = scmp.eq.s32.totalorder %s36, 1
      %p248 = por %p246, %p247
      %p250 = scmp.ne.s32.totalorder %s235, %s249
      %p251 = scmp.eq.s32.totalorder %s36, 0
      %p252 = por %p250, %p251
      %s254 = sadd.s32 %s253, 1
      %p257 = scmp.eq.s32.totalorder %s30, 1
      %p258 = scmp.ne.s32.totalorder %s253, %s255
      %p259 = scmp.eq.s32.totalorder %s30, 0
      %p260 = por %p258, %p259
      %p261 = scmp.ne.s32.totalorder %s253, %s255
      %p262 = scmp.eq.s32.totalorder %s35, 1
      %p263 = por %p261, %p262
      %p264 = scmp.ne.s32.totalorder %s255, %s256
      %p265 = scmp.eq.s32.totalorder %s35, 0
      %p266 = por %p264, %p265
      %p267 = scmp.ne.s32.totalorder %s255, %s256
      %p268 = scmp.eq.s32.totalorder %s36, 1
      %p269 = por %p267, %p268
      %p271 = scmp.ne.s32.totalorder %s256, %s270
      %p272 = scmp.eq.s32.totalorder %s36, 0
      %p273 = por %p271, %p272
      %s275 = sadd.s32 %s274, 1
      %p278 = scmp.eq.s32.totalorder %s30, 1
      %p279 = scmp.ne.s32.totalorder %s274, %s276
      %p280 = scmp.eq.s32.totalorder %s30, 0
      %p281 = por %p279, %p280
      %p282 = scmp.ne.s32.totalorder %s274, %s276
      %p283 = scmp.eq.s32.totalorder %s35, 1
      %p284 = por %p282, %p283
      %p285 = scmp.ne.s32.totalorder %s276, %s277
      %p286 = scmp.eq.s32.totalorder %s35, 0
      %p287 = por %p285, %p286
      %p288 = scmp.ne.s32.totalorder %s276, %s277
      %p289 = scmp.eq.s32.totalorder %s36, 1
      %p290 = por %p288, %p289
      %p292 = scmp.ne.s32.totalorder %s277, %s291
      %p293 = scmp.eq.s32.totalorder %s36, 0
      %p294 = por %p292, %p293
      %s295 = ssub.s32 %s30, %s37
      %p296 = scmp.eq.s32.totalorder %s295, 0
      %s298 = sadd.s32 %s297, 1
      %s299 = scalar_select %p296, %s297, %s298
      %p302 = pneg %p296
      %p303 = scmp.eq.s32.totalorder %s30, 1
      %p304 = por %p302, %p303
      %p305 = scmp.ne.s32.totalorder %s297, %s300
      %p306 = scmp.eq.s32.totalorder %s30, 0
      %p307 = por %p305, %p306
      %p308 = scmp.ne.s32.totalorder %s297, %s300
      %p309 = scmp.eq.s32.totalorder %s35, 1
      %p310 = por %p308, %p309
      %p311 = scmp.ne.s32.totalorder %s300, %s301
      %p312 = scmp.eq.s32.totalorder %s35, 0
      %p313 = por %p311, %p312
      %p314 = scmp.ne.s32.totalorder %s300, %s301
      %p315 = scmp.eq.s32.totalorder %s36, 1
      %p316 = por %p314, %p315
      %p318 = scmp.ne.s32.totalorder %s301, %s317
      %p319 = scmp.eq.s32.totalorder %s36, 0
      %p320 = por %p318, %p319
      %p321 = scmp.le.s32.totalorder 1, %s30
      %p322 = scmp.lt.s32.totalorder %s30, 3
      %p323 = pnand %p321, %p322
      %p324 = pneg %p323
      // Predicated region
      $region9: #{tpu_custom_call.1} parent=5 // pred_check
        _
      $region10: #{tpu_custom_call.1} parent=5 // pred_check_branch
        %326 = sbr.rel (%p323) target = $region12
      $region11: #{tpu_custom_call.1} parent=5 // pred_region
        %s327 = ssub.s32 %s30, 1
        // Predicated region
        $region13: #{tpu_custom_call.1} parent=11 // pred_check
          %p328 = pneg %p77
        $region14: #{tpu_custom_call.1} parent=11 // pred_check_branch
          %330 = sbr.rel (%p328) target = $region16
        $region15: #{tpu_custom_call.1} parent=11 // pred_region
          %s332 = ssub.s32 16, 16
          %333 = vsyncadd [#allocation7], %s332
          %s335 = sshll.u32 [#allocation6], 4
          %s336 = int_to_ptr.vmem [resolvable:$true] %s335
          %338 = dma.hbm_to_vmem [thread:$0]  %s1, 16, %s336, [#allocation7]
        $region16: #{tpu_custom_call.1} parent=11 // pred_fallthru
          _
        // Predicated region
        $region17: #{tpu_custom_call.1} parent=11 // pred_check
          %p339 = pneg %p98
        $region18: #{tpu_custom_call.1} parent=11 // pred_check_branch
          %341 = sbr.rel (%p339) target = $region20
        $region19: #{tpu_custom_call.1} parent=11 // pred_region
          %s343 = ssub.s32 16, 16
          %344 = vsyncadd [#allocation7], %s343
          %s346 = sshll.u32 [#allocation8], 4
          %s347 = int_to_ptr.vmem [resolvable:$true] %s346
          %349 = dma.hbm_to_vmem [thread:$0]  %s2, 16, %s347, [#allocation7]
        $region20: #{tpu_custom_call.1} parent=11 // pred_fallthru
          _
        // Predicated region
        $region21: #{tpu_custom_call.1} parent=11 // pred_check
          %p350 = pneg %p119
        $region22: #{tpu_custom_call.1} parent=11 // pred_check_branch
          %352 = sbr.rel (%p350) target = $region24
        $region23: #{tpu_custom_call.1} parent=11 // pred_region
          %s354 = ssub.s32 256, 256
          %355 = vsyncadd [#allocation10], %s354
          %s356 = sshll.u32 [#allocation9], 4
          %s357 = int_to_ptr.vmem [resolvable:$true] %s356
          %362 = dma.hbm_to_vmem [thread:$0]  %s3, 256, %s357, [#allocation10], 64, 64, 4
        $region24: #{tpu_custom_call.1} parent=11 // pred_fallthru
          _
        // Predicated region
        $region25: #{tpu_custom_call.1} parent=11 // pred_check
          %p363 = pneg %p140
        $region26: #{tpu_custom_call.1} parent=11 // pred_check_branch
          %365 = sbr.rel (%p363) target = $region28
        $region27: #{tpu_custom_call.1} parent=11 // pred_region
          %s367 = ssub.s32 256, 256
          %368 = vsyncadd [#allocation10], %s367
          %s369 = sshll.u32 [#allocation11], 4
          %s370 = int_to_ptr.vmem [resolvable:$true] %s369
          %375 = dma.hbm_to_vmem [thread:$0]  %s4, 256, %s370, [#allocation10], 64, 64, 4
        $region28: #{tpu_custom_call.1} parent=11 // pred_fallthru
          _
        // Predicated region
        $region29: #{tpu_custom_call.1} parent=11 // pred_check
          %p376 = pneg %p161
        $region30: #{tpu_custom_call.1} parent=11 // pred_check_branch
          %378 = sbr.rel (%p376) target = $region32
        $region31: #{tpu_custom_call.1} parent=11 // pred_region
          %s380 = ssub.s32 16, 16
          %381 = vsyncadd [#allocation13], %s380
          %s383 = sshll.u32 [#allocation12], 4
          %s384 = int_to_ptr.vmem [resolvable:$true] %s383
          %386 = dma.hbm_to_vmem [thread:$0]  %s5, 16, %s384, [#allocation13]
        $region32: #{tpu_custom_call.1} parent=11 // pred_fallthru
          _
        // Predicated region
        $region33: #{tpu_custom_call.1} parent=11 // pred_check
          %p387 = pneg %p182
        $region34: #{tpu_custom_call.1} parent=11 // pred_check_branch
          %389 = sbr.rel (%p387) target = $region36
        $region35: #{tpu_custom_call.1} parent=11 // pred_region
          %s391 = ssub.s32 16, 16
          %392 = vsyncadd [#allocation13], %s391
          %s394 = sshll.u32 [#allocation14], 4
          %s395 = int_to_ptr.vmem [resolvable:$true] %s394
          %397 = dma.hbm_to_vmem [thread:$0]  %s6, 16, %s395, [#allocation13]
        $region36: #{tpu_custom_call.1} parent=11 // pred_fallthru
          _
        // Predicated region
        $region37: #{tpu_custom_call.1} parent=11 // pred_check
          %p398 = pneg %p203
        $region38: #{tpu_custom_call.1} parent=11 // pred_check_branch
          %400 = sbr.rel (%p398) target = $region40
        $region39: #{tpu_custom_call.1} parent=11 // pred_region
          %s402 = ssub.s32 16, 16
          %403 = vsyncadd [#allocation16], %s402
          %s405 = sshll.u32 [#allocation15], 4
          %s406 = int_to_ptr.vmem [resolvable:$true] %s405
          %408 = dma.hbm_to_vmem [thread:$0]  %s7, 16, %s406, [#allocation16]
        $region40: #{tpu_custom_call.1} parent=11 // pred_fallthru
          _
        // Predicated region
        $region41: #{tpu_custom_call.1} parent=11 // pred_check
          %p409 = pneg %p224
        $region42: #{tpu_custom_call.1} parent=11 // pred_check_branch
          %411 = sbr.rel (%p409) target = $region44
        $region43: #{tpu_custom_call.1} parent=11 // pred_region
          %s413 = ssub.s32 256, 256
          %414 = vsyncadd [#allocation16], %s413
          %s415 = sshll.u32 [#allocation17], 4
          %s416 = int_to_ptr.vmem [resolvable:$true] %s415
          %421 = dma.hbm_to_vmem [thread:$0]  %s8, 256, %s416, [#allocation16], 64, 64, 4
        $region44: #{tpu_custom_call.1} parent=11 // pred_fallthru
          _
        // Predicated region
        $region45: #{tpu_custom_call.1} parent=11 // pred_check
          %p422 = pneg %p245
        $region46: #{tpu_custom_call.1} parent=11 // pred_check_branch
          %424 = sbr.rel (%p422) target = $region48
        $region47: #{tpu_custom_call.1} parent=11 // pred_region
          %s426 = ssub.s32 16, 16
          %427 = vsyncadd [#allocation19], %s426
          %s429 = sshll.u32 [#allocation18], 4
          %s430 = int_to_ptr.vmem [resolvable:$true] %s429
          %432 = dma.hbm_to_vmem [thread:$0]  %s9, 16, %s430, [#allocation19]
        $region48: #{tpu_custom_call.1} parent=11 // pred_fallthru
          _
        // Predicated region
        $region49: #{tpu_custom_call.1} parent=11 // pred_check
          %p433 = pneg %p266
        $region50: #{tpu_custom_call.1} parent=11 // pred_check_branch
          %435 = sbr.rel (%p433) target = $region52
        $region51: #{tpu_custom_call.1} parent=11 // pred_region
          %s437 = ssub.s32 1024, 1024
          %438 = vsyncadd [#allocation19], %s437
          %s439 = sshll.u32 [#allocation20], 4
          %s440 = int_to_ptr.vmem [resolvable:$true] %s439
          %445 = dma.hbm_to_vmem [thread:$0]  %s10, 1024, %s440, [#allocation19], 64, 64, 4
        $region52: #{tpu_custom_call.1} parent=11 // pred_fallthru
          _
        // Predicated region
        $region53: #{tpu_custom_call.1} parent=11 // pred_check
          %p446 = pneg %p287
        $region54: #{tpu_custom_call.1} parent=11 // pred_check_branch
          %448 = sbr.rel (%p446) target = $region56
        $region55: #{tpu_custom_call.1} parent=11 // pred_region
          %s450 = ssub.s32 16, 16
          %451 = vsyncadd [#allocation22], %s450
          %s453 = sshll.u32 [#allocation21], 4
          %s454 = int_to_ptr.vmem [resolvable:$true] %s453
          %456 = dma.hbm_to_vmem [thread:$0]  %s11, 16, %s454, [#allocation22]
        $region56: #{tpu_custom_call.1} parent=11 // pred_fallthru
          _
      $region12: #{tpu_custom_call.1} parent=5 // pred_fallthru
        _
      %p457 = scmp.lt.s32.totalorder %s30, 2
      // Predicated region
      $region57: #{tpu_custom_call.1} parent=5 // pred_check
        %p458 = pneg %p457
      $region58: #{tpu_custom_call.1} parent=5 // pred_check_branch
        %460 = sbr.rel (%p458) target = $region60
      $region59: #{tpu_custom_call.1} parent=5 // pred_region
        // Predicated region
        $region61: #{tpu_custom_call.1} parent=59 // pred_check
          %p461 = pneg %p50
        $region62: #{tpu_custom_call.1} parent=59 // pred_check_branch
          %463 = sbr.rel (%p461) target = $region64
        $region63: #{tpu_custom_call.1} parent=59 // pred_region
          %s464 = sand.u32 %s40, 1
          %s465 = scalar_lea.sflag [#allocation4], %s464
          %s466 = sand.u32 %s40, 1
          %s467 = smul.addr %s466, 8
          %s468 = scalar_lea.vmem [#allocation3], %s467
          %s470 = ssub.s32 128, 128
          %471 = vsyncadd %s465, %s470
          %s472 = smul.addr %s30, 128
          %s473 = scalar_lea.hbm %s0, %s472
          %s475 = sshll.u32 %s468, 4
          %s476 = int_to_ptr.vmem [resolvable:$true] %s475
          %478 = dma.hbm_to_vmem [thread:$0]  %s473, 128, %s476, %s465
        $region64: #{tpu_custom_call.1} parent=59 // pred_fallthru
          _
      $region60: #{tpu_custom_call.1} parent=5 // pred_fallthru
        _
      %p479 = scmp.le.s32.totalorder 1, %s30
      %p480 = scmp.lt.s32.totalorder %s30, 3
      %p481 = pnand %p479, %p480
      %p482 = pneg %p481
      // Predicated region
      $region65: #{tpu_custom_call.1} parent=5 // pred_check
        _
      $region66: #{tpu_custom_call.1} parent=5 // pred_check_branch
        %484 = sbr.rel (%p481) target = $region68
      $region67: #{tpu_custom_call.1} parent=5 // pred_region
        %s485 = ssub.s32 %s30, 1
        %s486 = sand.u32 %s43, 1
        %s487 = scalar_lea.sflag [#allocation4], %s486
        %s488 = sand.u32 %s43, 1
        %s489 = smul.addr %s488, 8
        %s490 = scalar_lea.vmem [#allocation3], %s489
        // Predicated region
        $region69: #{tpu_custom_call.1} parent=67 // pred_check
          %p491 = pneg %p56
        $region70: #{tpu_custom_call.1} parent=67 // pred_check_branch
          %493 = sbr.rel (%p491) target = $region72
        $region71: #{tpu_custom_call.1} parent=67 // pred_region
          %494 = dma.done %s487, 128
        $region72: #{tpu_custom_call.1} parent=67 // pred_fallthru
          _
        // Predicated region
        $region73: #{tpu_custom_call.1} parent=67 // pred_check
          %p495 = pneg %p77
        $region74: #{tpu_custom_call.1} parent=67 // pred_check_branch
          %497 = sbr.rel (%p495) target = $region76
        $region75: #{tpu_custom_call.1} parent=67 // pred_region
          %498 = dma.done [#allocation7], 16
        $region76: #{tpu_custom_call.1} parent=67 // pred_fallthru
          _
        // Predicated region
        $region77: #{tpu_custom_call.1} parent=67 // pred_check
          %p499 = pneg %p98
        $region78: #{tpu_custom_call.1} parent=67 // pred_check_branch
          %501 = sbr.rel (%p499) target = $region80
        $region79: #{tpu_custom_call.1} parent=67 // pred_region
          %502 = dma.done [#allocation7], 16
        $region80: #{tpu_custom_call.1} parent=67 // pred_fallthru
          _
        // Predicated region
        $region81: #{tpu_custom_call.1} parent=67 // pred_check
          %p503 = pneg %p119
        $region82: #{tpu_custom_call.1} parent=67 // pred_check_branch
          %505 = sbr.rel (%p503) target = $region84
        $region83: #{tpu_custom_call.1} parent=67 // pred_region
          %506 = dma.done [#allocation10], 256
        $region84: #{tpu_custom_call.1} parent=67 // pred_fallthru
          _
        // Predicated region
        $region85: #{tpu_custom_call.1} parent=67 // pred_check
          %p507 = pneg %p140
        $region86: #{tpu_custom_call.1} parent=67 // pred_check_branch
          %509 = sbr.rel (%p507) target = $region88
        $region87: #{tpu_custom_call.1} parent=67 // pred_region
          %510 = dma.done [#allocation10], 256
        $region88: #{tpu_custom_call.1} parent=67 // pred_fallthru
          _
        // Predicated region
        $region89: #{tpu_custom_call.1} parent=67 // pred_check
          %p511 = pneg %p161
        $region90: #{tpu_custom_call.1} parent=67 // pred_check_branch
          %513 = sbr.rel (%p511) target = $region92
        $region91: #{tpu_custom_call.1} parent=67 // pred_region
          %514 = dma.done [#allocation13], 16
        $region92: #{tpu_custom_call.1} parent=67 // pred_fallthru
          _
        // Predicated region
        $region93: #{tpu_custom_call.1} parent=67 // pred_check
          %p515 = pneg %p182
        $region94: #{tpu_custom_call.1} parent=67 // pred_check_branch
          %517 = sbr.rel (%p515) target = $region96
        $region95: #{tpu_custom_call.1} parent=67 // pred_region
          %518 = dma.done [#allocation13], 16
        $region96: #{tpu_custom_call.1} parent=67 // pred_fallthru
          _
        // Predicated region
        $region97: #{tpu_custom_call.1} parent=67 // pred_check
          %p519 = pneg %p203
        $region98: #{tpu_custom_call.1} parent=67 // pred_check_branch
          %521 = sbr.rel (%p519) target = $region100
        $region99: #{tpu_custom_call.1} parent=67 // pred_region
          %522 = dma.done [#allocation16], 16
        $region100: #{tpu_custom_call.1} parent=67 // pred_fallthru
          _
        // Predicated region
        $region101: #{tpu_custom_call.1} parent=67 // pred_check
          %p523 = pneg %p224
        $region102: #{tpu_custom_call.1} parent=67 // pred_check_branch
          %525 = sbr.rel (%p523) target = $region104
        $region103: #{tpu_custom_call.1} parent=67 // pred_region
          %526 = dma.done [#allocation16], 256
        $region104: #{tpu_custom_call.1} parent=67 // pred_fallthru
          _
        // Predicated region
        $region105: #{tpu_custom_call.1} parent=67 // pred_check
          %p527 = pneg %p245
        $region106: #{tpu_custom_call.1} parent=67 // pred_check_branch
          %529 = sbr.rel (%p527) target = $region108
        $region107: #{tpu_custom_call.1} parent=67 // pred_region
          %530 = dma.done [#allocation19], 16
        $region108: #{tpu_custom_call.1} parent=67 // pred_fallthru
          _
        // Predicated region
        $region109: #{tpu_custom_call.1} parent=67 // pred_check
          %p531 = pneg %p266
        $region110: #{tpu_custom_call.1} parent=67 // pred_check_branch
          %533 = sbr.rel (%p531) target = $region112
        $region111: #{tpu_custom_call.1} parent=67 // pred_region
          %534 = dma.done [#allocation19], 1024
        $region112: #{tpu_custom_call.1} parent=67 // pred_fallthru
          _
        // Predicated region
        $region113: #{tpu_custom_call.1} parent=67 // pred_check
          %p535 = pneg %p287
        $region114: #{tpu_custom_call.1} parent=67 // pred_check_branch
          %537 = sbr.rel (%p535) target = $region116
        $region115: #{tpu_custom_call.1} parent=67 // pred_region
          %538 = dma.done [#allocation22], 16
        $region116: #{tpu_custom_call.1} parent=67 // pred_fallthru
          _
        %s539 = sand.u32 %s43, 1
        %s540 = scalar_lea.sflag [#allocation4], %s539
        %s541 = sand.u32 %s43, 1
        %s542 = smul.addr %s541, 8
        %s543 = scalar_lea.vmem [#allocation3], %s542
        %p544 = pneg %p56
        %p545 = pneg %p53
        %p546 = pneg %p77
        %p547 = pneg %p74
        %p548 = pneg %p98
        %p549 = pneg %p95
        %p550 = pneg %p119
        %p551 = pneg %p116
        %p552 = pneg %p140
        %p553 = pneg %p137
        %p554 = pneg %p161
        %p555 = pneg %p158
        %p556 = pneg %p182
        %p557 = pneg %p179
        %p558 = pneg %p203
        %p559 = pneg %p200
        %p560 = pneg %p224
        %p561 = pneg %p221
        %p562 = pneg %p245
        %p563 = pneg %p242
        %p564 = pneg %p266
        %p565 = pneg %p263
        %p566 = pneg %p287
        %p567 = pneg %p284
        %p568 = pneg %p313
        %p569 = pneg %p310
        %s570 = sand.u32 %s300, 1
        %s571 = scalar_lea.sflag [#allocation5], %s570
        %s572 = sand.u32 %s300, 1
        %s573 = smul.addr %s572, 8
        %s574 = scalar_lea.vmem [#allocation23], %s573
        %v576 = vld [vmem:[%s490] sm:$0xff]
        %v577 = vld [vmem:[#allocation6] sm:$0x1]
        %v578 = vld [vmem:[#allocation8] sm:$0x1]
        %vm579 = vcmask 261120
        %v580 = vsel %vm579, %v576, 0.0
        %581 = vadd.xlane.f32.xlu0 %v580
        %v582 = vpop.xlane.xlu0 %581
        %v583 = vrcp.pop 32.0
        %v584 = vmul.f32 %v582, %v583
        %v585 = vsub.f32 %v576, %v584
        %v586 = vmul.f32 %v585, %v585
        %v587 = vsel %vm579, %v586, 0.0
        %588 = vadd.xlane.f32.xlu0 %v587
        %v589 = vpop.xlane.xlu0 %588
        %v590 = vmul.f32 %v589, %v583
        %v591 = vadd.f32 %v590, 1e-05
        %v592 = vrsqrt.pop %v591
        %v593 = vmul.f32 %v585, %v592
        %v595 = vlaneseq
        %v596 = vshrl.u32 %v595, 7
        %v597 = vsub.s32 0, %v596
        %v598 = vrot.slane %v577, %v597
        %v600 = vmul.f32 %v593, %v598
        %v602 = vlaneseq
        %v603 = vshrl.u32 %v602, 7
        %v604 = vsub.s32 0, %v603
        %v605 = vrot.slane %v578, %v604
        %v607 = vadd.f32 %v600, %v605
        %v608 = vpack.c.bf16 %v607, %v607
        %v609 = vld [vmem:[#allocation9] sm:$0xf]
        %v610 = vld [vmem:[#allocation9 + $0x4] sm:$0xf]
        %v611 = vld [vmem:[#allocation9 + $0x8] sm:$0xf]
        %v612 = vld [vmem:[#allocation9 + $0xc] sm:$0xf]
        %v617 = vunpack.c.l.b16 %v609
        %v618 = vunpack.c.l.b16 %v610
        %v619 = vunpack.c.l.b16 %v611
        %v620 = vunpack.c.l.b16 %v612
        %v621 = vpack.c.b16 %v618, %v617
        %v622 = vpack.c.b16 %v620, %v619
        %v626 = vsel %vm579, %v608, 0
        %628 = vmatprep.subr.bf16.mxu0 0
        %629 = vmatpush1.bf16.msra.mxu0 %v621
        %630 = vmatprep.subr.bf16.mxu0 0
        %631 = vmatpush1.bf16.msra.mxu0 %v622
        %632 = vmatprep.subr.bf16.mxu0 0
        %633 = vmatpush1.bf16.msra.mxu0 0
        %634 = vmatprep.subr.bf16.mxu0 0
        %635 = vmatpush1.bf16.msra.mxu0 0
        %636 = vmatprep.subr.bf16.mxu0 0
        %637 = vmatpush1.bf16.msra.mxu0 0
        %638 = vmatprep.subr.bf16.mxu0 0
        %639 = vmatpush1.bf16.msra.mxu0 0
        %640 = vmatprep.subr.bf16.mxu0 0
        %641 = vmatpush1.bf16.msra.mxu0 0
        %642 = vmatprep.subr.bf16.mxu0 0
        %643 = vmatpush1.bf16.msra.mxu0 0
        %644 = vmatprep.subr.bf16.mxu0 0
        %645 = vmatpush1.bf16.msra.mxu0 0
        %646 = vmatprep.subr.bf16.mxu0 0
        %647 = vmatpush1.bf16.msra.mxu0 0
        %648 = vmatprep.subr.bf16.mxu0 0
        %649 = vmatpush1.bf16.msra.mxu0 0
        %650 = vmatprep.subr.bf16.mxu0 0
        %651 = vmatpush1.bf16.msra.mxu0 0
        %652 = vmatprep.subr.bf16.mxu0 0
        %653 = vmatpush1.bf16.msra.mxu0 0
        %654 = vmatprep.subr.bf16.mxu0 0
        %655 = vmatpush1.bf16.msra.mxu0 0
        %656 = vmatprep.subr.bf16.mxu0 0
        %657 = vmatpush1.bf16.msra.mxu0 0
        %658 = vmatprep.subr.bf16.mxu0 0
        %659 = vmatpush1.bf16.msra.mxu0 0
        %660 = vmatprep.mubr.bf16.mxu0 0
        %661 = vmatmul.mubr.bf16.gmra.mrb[0].mxu0 %v626
        %v662 = vpop.f32.mrb[0].mxu0
        %v663 = vadd.f32 0.0, %v662
        %v664 = vpop.f32.mrb[0].mxu0
        %v665 = vpop.f32.mrb[0].mxu0
        %v666 = vpop.f32.mrb[0].mxu0
        %667 = vdwg.mxu0
        %v668 = vpack.c.bf16 %v663, %v663
        %670 = vrot.lane.b32.xlu0 %v668, 96
        %v671 = vpop.permute.xlu0 %670
        %vm672 = vcmask 64512
        %v674 = vsel %vm672, %v668, 0
        %v677 = vsel %vm672, %v671, 0
        %679 = vmatprep.subr.bf16.mxu0 0
        %680 = vmatpush1.bf16.xpose.msra.mxu0 %v677
        %681 = vmatprep.subr.bf16.mxu0 0
        %682 = vmatpush1.bf16.xpose.msra.mxu0 0
        %683 = vmatprep.subr.bf16.mxu0 0
        %684 = vmatpush1.bf16.xpose.msra.mxu0 0
        %685 = vmatprep.subr.bf16.mxu0 0
        %686 = vmatpush1.bf16.xpose.msra.mxu0 0
        %687 = vmatprep.subr.bf16.mxu0 0
        %688 = vmatpush1.bf16.xpose.msra.mxu0 0
        %689 = vmatprep.subr.bf16.mxu0 0
        %690 = vmatpush1.bf16.xpose.msra.mxu0 0
        %691 = vmatprep.subr.bf16.mxu0 0
        %692 = vmatpush1.bf16.xpose.msra.mxu0 0
        %693 = vmatprep.subr.bf16.mxu0 0
        %694 = vmatpush1.bf16.xpose.msra.mxu0 0
        %695 = vmatprep.subr.bf16.mxu0 0
        %696 = vmatpush1.bf16.xpose.msra.mxu0 0
        %697 = vmatprep.subr.bf16.mxu0 0
        %698 = vmatpush1.bf16.xpose.msra.mxu0 0
        %699 = vmatprep.subr.bf16.mxu0 0
        %700 = vmatpush1.bf16.xpose.msra.mxu0 0
        %701 = vmatprep.subr.bf16.mxu0 0
        %702 = vmatpush1.bf16.xpose.msra.mxu0 0
        %703 = vmatprep.subr.bf16.mxu0 0
        %704 = vmatpush1.bf16.xpose.msra.mxu0 0
        %705 = vmatprep.subr.bf16.mxu0 0
        %706 = vmatpush1.bf16.xpose.msra.mxu0 0
        %707 = vmatprep.subr.bf16.mxu0 0
        %708 = vmatpush1.bf16.xpose.msra.mxu0 0
        %709 = vmatprep.subr.bf16.mxu0 0
        %710 = vmatpush1.bf16.xpose.msra.mxu0 0
        %711 = vmatprep.mubr.bf16.mxu0 0
        %712 = vmatmul.mubr.bf16.gmra.mrb[0].mxu0 %v674
        %v713 = vpop.f32.mrb[0].mxu0
        %v714 = vadd.f32 0.0, %v713
        %v715 = vpop.f32.mrb[0].mxu0
        %v716 = vpop.f32.mrb[0].mxu0
        %v717 = vpop.f32.mrb[0].mxu0
        %718 = vdwg.mxu0
        %v719 = vsel %vm672, %v714, -inf
        %720 = vmax.xlane.f32.xlu0 %v719
        %v721 = vpop.xlane.xlu0 %720
        %v722 = vsub.f32 %v714, %v721
        %v723 = vmul.f32 %v722, 1.442695
        %v724 = vpow.pop %v723
        %v725 = vsel %vm672, %v724, 0.0
        %726 = vadd.xlane.f32.xlu0 %v725
        %v727 = vpop.xlane.xlu0 %726
        %v728 = vrcp.pop %v727
        %v729 = vmul.f32 %v724, %v728
        %v730 = vpack.c.bf16 %v729, %v729
        %731 = vrot.lane.b32.xlu0 %v668, 64
        %v732 = vpop.permute.xlu0 %731
        %v734 = vsel %vm672, %v730, 0
        %vm736 = vcmask 1043456
        %v738 = vsel %vm736, %v732, 0
        %740 = vmatprep.subr.bf16.mxu0 0
        %741 = vmatpush1.bf16.msra.mxu0 %v738
        %742 = vmatprep.subr.bf16.mxu0 0
        %743 = vmatpush1.bf16.msra.mxu0 0
        %744 = vmatprep.subr.bf16.mxu0 0
        %745 = vmatpush1.bf16.msra.mxu0 0
        %746 = vmatprep.subr.bf16.mxu0 0
        %747 = vmatpush1.bf16.msra.mxu0 0
        %748 = vmatprep.subr.bf16.mxu0 0
        %749 = vmatpush1.bf16.msra.mxu0 0
        %750 = vmatprep.subr.bf16.mxu0 0
        %751 = vmatpush1.bf16.msra.mxu0 0
        %752 = vmatprep.subr.bf16.mxu0 0
        %753 = vmatpush1.bf16.msra.mxu0 0
        %754 = vmatprep.subr.bf16.mxu0 0
        %755 = vmatpush1.bf16.msra.mxu0 0
        %756 = vmatprep.subr.bf16.mxu0 0
        %757 = vmatpush1.bf16.msra.mxu0 0
        %758 = vmatprep.subr.bf16.mxu0 0
        %759 = vmatpush1.bf16.msra.mxu0 0
        %760 = vmatprep.subr.bf16.mxu0 0
        %761 = vmatpush1.bf16.msra.mxu0 0
        %762 = vmatprep.subr.bf16.mxu0 0
        %763 = vmatpush1.bf16.msra.mxu0 0
        %764 = vmatprep.subr.bf16.mxu0 0
        %765 = vmatpush1.bf16.msra.mxu0 0
        %766 = vmatprep.subr.bf16.mxu0 0
        %767 = vmatpush1.bf16.msra.mxu0 0
        %768 = vmatprep.subr.bf16.mxu0 0
        %769 = vmatpush1.bf16.msra.mxu0 0
        %770 = vmatprep.subr.bf16.mxu0 0
        %771 = vmatpush1.bf16.msra.mxu0 0
        %772 = vmatprep.mubr.bf16.mxu0 0
        %773 = vmatmul.mubr.bf16.gmra.mrb[0].mxu0 %v734
        %v774 = vpop.f32.mrb[0].mxu0
        %v775 = vadd.f32 0.0, %v774
        %v776 = vpop.f32.mrb[0].mxu0
        %v777 = vpop.f32.mrb[0].mxu0
        %v778 = vpop.f32.mrb[0].mxu0
        %779 = vdwg.mxu0
        %780 = vst.msk [vmem:[#allocation2] sm:$0xff] %vm672, %v775
        %781 = vrot.lane.b32.xlu0 %v668, 120
        %v782 = vpop.permute.xlu0 %781
        %783 = vrot.lane.b32.xlu0 %v668, 88
        %v784 = vpop.permute.xlu0 %783
        %v786 = vsel %vm672, %v782, 0
        %v789 = vsel %vm672, %v784, 0
        %791 = vmatprep.subr.bf16.mxu0 0
        %792 = vmatpush1.bf16.xpose.msra.mxu0 %v789
        %793 = vmatprep.subr.bf16.mxu0 0
        %794 = vmatpush1.bf16.xpose.msra.mxu0 0
        %795 = vmatprep.subr.bf16.mxu0 0
        %796 = vmatpush1.bf16.xpose.msra.mxu0 0
        %797 = vmatprep.subr.bf16.mxu0 0
        %798 = vmatpush1.bf16.xpose.msra.mxu0 0
        %799 = vmatprep.subr.bf16.mxu0 0
        %800 = vmatpush1.bf16.xpose.msra.mxu0 0
        %801 = vmatprep.subr.bf16.mxu0 0
        %802 = vmatpush1.bf16.xpose.msra.mxu0 0
        %803 = vmatprep.subr.bf16.mxu0 0
        %804 = vmatpush1.bf16.xpose.msra.mxu0 0
        %805 = vmatprep.subr.bf16.mxu0 0
        %806 = vmatpush1.bf16.xpose.msra.mxu0 0
        %807 = vmatprep.subr.bf16.mxu0 0
        %808 = vmatpush1.bf16.xpose.msra.mxu0 0
        %809 = vmatprep.subr.bf16.mxu0 0
        %810 = vmatpush1.bf16.xpose.msra.mxu0 0
        %811 = vmatprep.subr.bf16.mxu0 0
        %812 = vmatpush1.bf16.xpose.msra.mxu0 0
        %813 = vmatprep.subr.bf16.mxu0 0
        %814 = vmatpush1.bf16.xpose.msra.mxu0 0
        %815 = vmatprep.subr.bf16.mxu0 0
        %816 = vmatpush1.bf16.xpose.msra.mxu0 0
        %817 = vmatprep.subr.bf16.mxu0 0
        %818 = vmatpush1.bf16.xpose.msra.mxu0 0
        %819 = vmatprep.subr.bf16.mxu0 0
        %820 = vmatpush1.bf16.xpose.msra.mxu0 0
        %821 = vmatprep.subr.bf16.mxu0 0
        %822 = vmatpush1.bf16.xpose.msra.mxu0 0
        %823 = vmatprep.mubr.bf16.mxu0 0
        %824 = vmatmul.mubr.bf16.gmra.mrb[0].mxu0 %v786
        %v825 = vpop.f32.mrb[0].mxu0
        %v826 = vadd.f32 0.0, %v825
        %v827 = vpop.f32.mrb[0].mxu0
        %v828 = vpop.f32.mrb[0].mxu0
        %v829 = vpop.f32.mrb[0].mxu0
        %830 = vdwg.mxu0
        %v831 = vsel %vm672, %v826, -inf
        %832 = vmax.xlane.f32.xlu0 %v831
        %v833 = vpop.xlane.xlu0 %832
        %v834 = vsub.f32 %v826, %v833
        %v835 = vmul.f32 %v834, 1.442695
        %v836 = vpow.pop %v835
        %v837 = vsel %vm672, %v836, 0.0
        %838 = vadd.xlane.f32.xlu0 %v837
        %v839 = vpop.xlane.xlu0 %838
        %v840 = vrcp.pop %v839
        %v841 = vmul.f32 %v836, %v840
        %v842 = vpack.c.bf16 %v841, %v841
        %843 = vrot.lane.b32.xlu0 %v668, 56
        %v844 = vpop.permute.xlu0 %843
        %v846 = vsel %vm672, %v842, 0
        %v849 = vsel %vm736, %v844, 0
        %851 = vmatprep.subr.bf16.mxu0 0
        %852 = vmatpush1.bf16.msra.mxu0 %v849
        %853 = vmatprep.subr.bf16.mxu0 0
        %854 = vmatpush1.bf16.msra.mxu0 0
        %855 = vmatprep.subr.bf16.mxu0 0
        %856 = vmatpush1.bf16.msra.mxu0 0
        %857 = vmatprep.subr.bf16.mxu0 0
        %858 = vmatpush1.bf16.msra.mxu0 0
        %859 = vmatprep.subr.bf16.mxu0 0
        %860 = vmatpush1.bf16.msra.mxu0 0
        %861 = vmatprep.subr.bf16.mxu0 0
        %862 = vmatpush1.bf16.msra.mxu0 0
        %863 = vmatprep.subr.bf16.mxu0 0
        %864 = vmatpush1.bf16.msra.mxu0 0
        %865 = vmatprep.subr.bf16.mxu0 0
        %866 = vmatpush1.bf16.msra.mxu0 0
        %867 = vmatprep.subr.bf16.mxu0 0
        %868 = vmatpush1.bf16.msra.mxu0 0
        %869 = vmatprep.subr.bf16.mxu0 0
        %870 = vmatpush1.bf16.msra.mxu0 0
        %871 = vmatprep.subr.bf16.mxu0 0
        %872 = vmatpush1.bf16.msra.mxu0 0
        %873 = vmatprep.subr.bf16.mxu0 0
        %874 = vmatpush1.bf16.msra.mxu0 0
        %875 = vmatprep.subr.bf16.mxu0 0
        %876 = vmatpush1.bf16.msra.mxu0 0
        %877 = vmatprep.subr.bf16.mxu0 0
        %878 = vmatpush1.bf16.msra.mxu0 0
        %879 = vmatprep.subr.bf16.mxu0 0
        %880 = vmatpush1.bf16.msra.mxu0 0
        %881 = vmatprep.subr.bf16.mxu0 0
        %882 = vmatpush1.bf16.msra.mxu0 0
        %883 = vmatprep.mubr.bf16.mxu0 0
        %884 = vmatmul.mubr.bf16.gmra.mrb[0].mxu0 %v846
        %v885 = vpop.f32.mrb[0].mxu0
        %v886 = vadd.f32 0.0, %v885
        %v887 = vpop.f32.mrb[0].mxu0
        %v888 = vpop.f32.mrb[0].mxu0
        %v889 = vpop.f32.mrb[0].mxu0
        %890 = vdwg.mxu0
        %892 = vrot.lane.b32.xlu0 %v886, 8
        %v893 = vpop.permute.xlu0 %892
        %vm895 = vcmask 130112
        %896 = vst.msk [vmem:[#allocation2] sm:$0xff] %vm895, %v893
        %897 = vrot.lane.b32.xlu0 %v668, 112
        %v898 = vpop.permute.xlu0 %897
        %899 = vrot.lane.b32.xlu0 %v668, 80
        %v900 = vpop.permute.xlu0 %899
        %v902 = vsel %vm672, %v898, 0
        %v905 = vsel %vm672, %v900, 0
        %907 = vmatprep.subr.bf16.mxu0 0
        %908 = vmatpush1.bf16.xpose.msra.mxu0 %v905
        %909 = vmatprep.subr.bf16.mxu0 0
        %910 = vmatpush1.bf16.xpose.msra.mxu0 0
        %911 = vmatprep.subr.bf16.mxu0 0
        %912 = vmatpush1.bf16.xpose.msra.mxu0 0
        %913 = vmatprep.subr.bf16.mxu0 0
        %914 = vmatpush1.bf16.xpose.msra.mxu0 0
        %915 = vmatprep.subr.bf16.mxu0 0
        %916 = vmatpush1.bf16.xpose.msra.mxu0 0
        %917 = vmatprep.subr.bf16.mxu0 0
        %918 = vmatpush1.bf16.xpose.msra.mxu0 0
        %919 = vmatprep.subr.bf16.mxu0 0
        %920 = vmatpush1.bf16.xpose.msra.mxu0 0
        %921 = vmatprep.subr.bf16.mxu0 0
        %922 = vmatpush1.bf16.xpose.msra.mxu0 0
        %923 = vmatprep.subr.bf16.mxu0 0
        %924 = vmatpush1.bf16.xpose.msra.mxu0 0
        %925 = vmatprep.subr.bf16.mxu0 0
        %926 = vmatpush1.bf16.xpose.msra.mxu0 0
        %927 = vmatprep.subr.bf16.mxu0 0
        %928 = vmatpush1.bf16.xpose.msra.mxu0 0
        %929 = vmatprep.subr.bf16.mxu0 0
        %930 = vmatpush1.bf16.xpose.msra.mxu0 0
        %931 = vmatprep.subr.bf16.mxu0 0
        %932 = vmatpush1.bf16.xpose.msra.mxu0 0
        %933 = vmatprep.subr.bf16.mxu0 0
        %934 = vmatpush1.bf16.xpose.msra.mxu0 0
        %935 = vmatprep.subr.bf16.mxu0 0
        %936 = vmatpush1.bf16.xpose.msra.mxu0 0
        %937 = vmatprep.subr.bf16.mxu0 0
        %938 = vmatpush1.bf16.xpose.msra.mxu0 0
        %939 = vmatprep.mubr.bf16.mxu0 0
        %940 = vmatmul.mubr.bf16.gmra.mrb[0].mxu0 %v902
        %v941 = vpop.f32.mrb[0].mxu0
        %v942 = vadd.f32 0.0, %v941
        %v943 = vpop.f32.mrb[0].mxu0
        %v944 = vpop.f32.mrb[0].mxu0
        %v945 = vpop.f32.mrb[0].mxu0
        %946 = vdwg.mxu0
        %v947 = vsel %vm672, %v942, -inf
        %948 = vmax.xlane.f32.xlu0 %v947
        %v949 = vpop.xlane.xlu0 %948
        %v950 = vsub.f32 %v942, %v949
        %v951 = vmul.f32 %v950, 1.442695
        %v952 = vpow.pop %v951
        %v953 = vsel %vm672, %v952, 0.0
        %954 = vadd.xlane.f32.xlu0 %v953
        %v955 = vpop.xlane.xlu0 %954
        %v956 = vrcp.pop %v955
        %v957 = vmul.f32 %v952, %v956
        %v958 = vpack.c.bf16 %v957, %v957
        %959 = vrot.lane.b32.xlu0 %v668, 48
        %v960 = vpop.permute.xlu0 %959
        %v962 = vsel %vm672, %v958, 0
        %v965 = vsel %vm736, %v960, 0
        %967 = vmatprep.subr.bf16.mxu0 0
        %968 = vmatpush1.bf16.msra.mxu0 %v965
        %969 = vmatprep.subr.bf16.mxu0 0
        %970 = vmatpush1.bf16.msra.mxu0 0
        %971 = vmatprep.subr.bf16.mxu0 0
        %972 = vmatpush1.bf16.msra.mxu0 0
        %973 = vmatprep.subr.bf16.mxu0 0
        %974 = vmatpush1.bf16.msra.mxu0 0
        %975 = vmatprep.subr.bf16.mxu0 0
        %976 = vmatpush1.bf16.msra.mxu0 0
        %977 = vmatprep.subr.bf16.mxu0 0
        %978 = vmatpush1.bf16.msra.mxu0 0
        %979 = vmatprep.subr.bf16.mxu0 0
        %980 = vmatpush1.bf16.msra.mxu0 0
        %981 = vmatprep.subr.bf16.mxu0 0
        %982 = vmatpush1.bf16.msra.mxu0 0
        %983 = vmatprep.subr.bf16.mxu0 0
        %984 = vmatpush1.bf16.msra.mxu0 0
        %985 = vmatprep.subr.bf16.mxu0 0
        %986 = vmatpush1.bf16.msra.mxu0 0
        %987 = vmatprep.subr.bf16.mxu0 0
        %988 = vmatpush1.bf16.msra.mxu0 0
        %989 = vmatprep.subr.bf16.mxu0 0
        %990 = vmatpush1.bf16.msra.mxu0 0
        %991 = vmatprep.subr.bf16.mxu0 0
        %992 = vmatpush1.bf16.msra.mxu0 0
        %993 = vmatprep.subr.bf16.mxu0 0
        %994 = vmatpush1.bf16.msra.mxu0 0
        %995 = vmatprep.subr.bf16.mxu0 0
        %996 = vmatpush1.bf16.msra.mxu0 0
        %997 = vmatprep.subr.bf16.mxu0 0
        %998 = vmatpush1.bf16.msra.mxu0 0
        %999 = vmatprep.mubr.bf16.mxu0 0
        %1000 = vmatmul.mubr.bf16.gmra.mrb[0].mxu0 %v962
        %v1001 = vpop.f32.mrb[0].mxu0
        %v1002 = vadd.f32 0.0, %v1001
        %v1003 = vpop.f32.mrb[0].mxu0
        %v1004 = vpop.f32.mrb[0].mxu0
        %v1005 = vpop.f32.mrb[0].mxu0
        %1006 = vdwg.mxu0
        %1008 = vrot.lane.b32.xlu0 %v1002, 16
        %v1009 = vpop.permute.xlu0 %1008
        %vm1011 = vcmask 195712
        %1012 = vst.msk [vmem:[#allocation2] sm:$0xff] %vm1011, %v1009
        %1013 = vrot.lane.b32.xlu0 %v668, 104
        %v1014 = vpop.permute.xlu0 %1013
        %1015 = vrot.lane.b32.xlu0 %v668, 72
        %v1016 = vpop.permute.xlu0 %1015
        %v1018 = vsel %vm672, %v1014, 0
        %v1021 = vsel %vm672, %v1016, 0
        %1023 = vmatprep.subr.bf16.mxu0 0
        %1024 = vmatpush1.bf16.xpose.msra.mxu0 %v1021
        %1025 = vmatprep.subr.bf16.mxu0 0
        %1026 = vmatpush1.bf16.xpose.msra.mxu0 0
        %1027 = vmatprep.subr.bf16.mxu0 0
        %1028 = vmatpush1.bf16.xpose.msra.mxu0 0
        %1029 = vmatprep.subr.bf16.mxu0 0
        %1030 = vmatpush1.bf16.xpose.msra.mxu0 0
        %1031 = vmatprep.subr.bf16.mxu0 0
        %1032 = vmatpush1.bf16.xpose.msra.mxu0 0
        %1033 = vmatprep.subr.bf16.mxu0 0
        %1034 = vmatpush1.bf16.xpose.msra.mxu0 0
        %1035 = vmatprep.subr.bf16.mxu0 0
        %1036 = vmatpush1.bf16.xpose.msra.mxu0 0
        %1037 = vmatprep.subr.bf16.mxu0 0
        %1038 = vmatpush1.bf16.xpose.msra.mxu0 0
        %1039 = vmatprep.subr.bf16.mxu0 0
        %1040 = vmatpush1.bf16.xpose.msra.mxu0 0
        %1041 = vmatprep.subr.bf16.mxu0 0
        %1042 = vmatpush1.bf16.xpose.msra.mxu0 0
        %1043 = vmatprep.subr.bf16.mxu0 0
        %1044 = vmatpush1.bf16.xpose.msra.mxu0 0
        %1045 = vmatprep.subr.bf16.mxu0 0
        %1046 = vmatpush1.bf16.xpose.msra.mxu0 0
        %1047 = vmatprep.subr.bf16.mxu0 0
        %1048 = vmatpush1.bf16.xpose.msra.mxu0 0
        %1049 = vmatprep.subr.bf16.mxu0 0
        %1050 = vmatpush1.bf16.xpose.msra.mxu0 0
        %1051 = vmatprep.subr.bf16.mxu0 0
        %1052 = vmatpush1.bf16.xpose.msra.mxu0 0
        %1053 = vmatprep.subr.bf16.mxu0 0
        %1054 = vmatpush1.bf16.xpose.msra.mxu0 0
        %1055 = vmatprep.mubr.bf16.mxu0 0
        %1056 = vmatmul.mubr.bf16.gmra.mrb[0].mxu0 %v1018
        %v1057 = vpop.f32.mrb[0].mxu0
        %v1058 = vadd.f32 0.0, %v1057
        %v1059 = vpop.f32.mrb[0].mxu0
        %v1060 = vpop.f32.mrb[0].mxu0
        %v1061 = vpop.f32.mrb[0].mxu0
        %1062 = vdwg.mxu0
        %v1063 = vsel %vm672, %v1058, -inf
        %1064 = vmax.xlane.f32.xlu0 %v1063
        %v1065 = vpop.xlane.xlu0 %1064
        %v1066 = vsub.f32 %v1058, %v1065
        %v1067 = vmul.f32 %v1066, 1.442695
        %v1068 = vpow.pop %v1067
        %v1069 = vsel %vm672, %v1068, 0.0
        %1070 = vadd.xlane.f32.xlu0 %v1069
        %v1071 = vpop.xlane.xlu0 %1070
        %v1072 = vrcp.pop %v1071
        %v1073 = vmul.f32 %v1068, %v1072
        %v1074 = vpack.c.bf16 %v1073, %v1073
        %1075 = vrot.lane.b32.xlu0 %v668, 40
        %v1076 = vpop.permute.xlu0 %1075
        %v1078 = vsel %vm672, %v1074, 0
        %v1081 = vsel %vm736, %v1076, 0
        %1083 = vmatprep.subr.bf16.mxu0 0
        %1084 = vmatpush1.bf16.msra.mxu0 %v1081
        %1085 = vmatprep.subr.bf16.mxu0 0
        %1086 = vmatpush1.bf16.msra.mxu0 0
        %1087 = vmatprep.subr.bf16.mxu0 0
        %1088 = vmatpush1.bf16.msra.mxu0 0
        %1089 = vmatprep.subr.bf16.mxu0 0
        %1090 = vmatpush1.bf16.msra.mxu0 0
        %1091 = vmatprep.subr.bf16.mxu0 0
        %1092 = vmatpush1.bf16.msra.mxu0 0
        %1093 = vmatprep.subr.bf16.mxu0 0
        %1094 = vmatpush1.bf16.msra.mxu0 0
        %1095 = vmatprep.subr.bf16.mxu0 0
        %1096 = vmatpush1.bf16.msra.mxu0 0
        %1097 = vmatprep.subr.bf16.mxu0 0
        %1098 = vmatpush1.bf16.msra.mxu0 0
        %1099 = vmatprep.subr.bf16.mxu0 0
        %1100 = vmatpush1.bf16.msra.mxu0 0
        %1101 = vmatprep.subr.bf16.mxu0 0
        %1102 = vmatpush1.bf16.msra.mxu0 0
        %1103 = vmatprep.subr.bf16.mxu0 0
        %1104 = vmatpush1.bf16.msra.mxu0 0
        %1105 = vmatprep.subr.bf16.mxu0 0
        %1106 = vmatpush1.bf16.msra.mxu0 0
        %1107 = vmatprep.subr.bf16.mxu0 0
        %1108 = vmatpush1.bf16.msra.mxu0 0
        %1109 = vmatprep.subr.bf16.mxu0 0
        %1110 = vmatpush1.bf16.msra.mxu0 0
        %1111 = vmatprep.subr.bf16.mxu0 0
        %1112 = vmatpush1.bf16.msra.mxu0 0
        %1113 = vmatprep.subr.bf16.mxu0 0
        %1114 = vmatpush1.bf16.msra.mxu0 0
        %1115 = vmatprep.mubr.bf16.mxu0 0
        %1116 = vmatmul.mubr.bf16.gmra.mrb[0].mxu0 %v1078
        %v1117 = vpop.f32.mrb[0].mxu0
        %v1118 = vadd.f32 0.0, %v1117
        %v1119 = vpop.f32.mrb[0].mxu0
        %v1120 = vpop.f32.mrb[0].mxu0
        %v1121 = vpop.f32.mrb[0].mxu0
        %1122 = vdwg.mxu0
        %1124 = vrot.lane.b32.xlu0 %v1118, 24
        %v1125 = vpop.permute.xlu0 %1124
        %vm1127 = vcmask 261312
        %1128 = vst.msk [vmem:[#allocation2] sm:$0xff] %vm1127, %v1125
        %v1129 = vld [vmem:[#allocation2] sm:$0xff]
        %v1130 = vpack.c.bf16 %v1129, %v1129
        %v1131 = vld [vmem:[#allocation11] sm:$0xf]
        %v1132 = vld [vmem:[#allocation11 + $0x4] sm:$0xf]
        %v1133 = vld [vmem:[#allocation11 + $0x8] sm:$0xf]
        %v1134 = vld [vmem:[#allocation11 + $0xc] sm:$0xf]
        %v1139 = vunpack.c.l.b16 %v1131
        %v1140 = vunpack.c.l.b16 %v1132
        %v1141 = vunpack.c.l.b16 %v1133
        %v1142 = vunpack.c.l.b16 %v1134
        %v1143 = vpack.c.b16 %v1140, %v1139
        %v1144 = vpack.c.b16 %v1142, %v1141
        %v1148 = vsel %vm579, %v1130, 0
        %1150 = vmatprep.subr.bf16.mxu0 0
        %1151 = vmatpush1.bf16.msra.mxu0 %v1143
        %1152 = vmatprep.subr.bf16.mxu0 0
        %1153 = vmatpush1.bf16.msra.mxu0 %v1144
        %1154 = vmatprep.subr.bf16.mxu0 0
        %1155 = vmatpush1.bf16.msra.mxu0 0
        %1156 = vmatprep.subr.bf16.mxu0 0
        %1157 = vmatpush1.bf16.msra.mxu0 0
        %1158 = vmatprep.subr.bf16.mxu0 0
        %1159 = vmatpush1.bf16.msra.mxu0 0
        %1160 = vmatprep.subr.bf16.mxu0 0
        %1161 = vmatpush1.bf16.msra.mxu0 0
        %1162 = vmatprep.subr.bf16.mxu0 0
        %1163 = vmatpush1.bf16.msra.mxu0 0
        %1164 = vmatprep.subr.bf16.mxu0 0
        %1165 = vmatpush1.bf16.msra.mxu0 0
        %1166 = vmatprep.subr.bf16.mxu0 0
        %1167 = vmatpush1.bf16.msra.mxu0 0
        %1168 = vmatprep.subr.bf16.mxu0 0
        %1169 = vmatpush1.bf16.msra.mxu0 0
        %1170 = vmatprep.subr.bf16.mxu0 0
        %1171 = vmatpush1.bf16.msra.mxu0 0
        %1172 = vmatprep.subr.bf16.mxu0 0
        %1173 = vmatpush1.bf16.msra.mxu0 0
        %1174 = vmatprep.subr.bf16.mxu0 0
        %1175 = vmatpush1.bf16.msra.mxu0 0
        %1176 = vmatprep.subr.bf16.mxu0 0
        %1177 = vmatpush1.bf16.msra.mxu0 0
        %1178 = vmatprep.subr.bf16.mxu0 0
        %1179 = vmatpush1.bf16.msra.mxu0 0
        %1180 = vmatprep.subr.bf16.mxu0 0
        %1181 = vmatpush1.bf16.msra.mxu0 0
        %1182 = vmatprep.mubr.bf16.mxu0 0
        %1183 = vmatmul.mubr.bf16.gmra.mrb[0].mxu0 %v1148
        %v1184 = vpop.f32.mrb[0].mxu0
        %v1185 = vadd.f32 0.0, %v1184
        %v1186 = vpop.f32.mrb[0].mxu0
        %v1187 = vpop.f32.mrb[0].mxu0
        %v1188 = vpop.f32.mrb[0].mxu0
        %1189 = vdwg.mxu0
        %v1190 = vadd.f32 %v576, %v1185
        %v1191 = vld [vmem:[#allocation12] sm:$0x1]
        %v1193 = vlaneseq
        %v1194 = vshrl.u32 %v1193, 7
        %v1195 = vsub.s32 0, %v1194
        %v1196 = vrot.slane %v1191, %v1195
        %v1198 = vadd.f32 %v1190, %v1196
        %v1199 = vld [vmem:[#allocation14] sm:$0x1]
        %v1200 = vld [vmem:[#allocation15] sm:$0x1]
        %v1201 = vsel %vm579, %v1198, 0.0
        %1202 = vadd.xlane.f32.xlu0 %v1201
        %v1203 = vpop.xlane.xlu0 %1202
        %v1204 = vmul.f32 %v1203, %v583
        %v1205 = vsub.f32 %v1198, %v1204
        %v1206 = vmul.f32 %v1205, %v1205
        %v1207 = vsel %vm579, %v1206, 0.0
        %1208 = vadd.xlane.f32.xlu0 %v1207
        %v1209 = vpop.xlane.xlu0 %1208
        %v1210 = vmul.f32 %v1209, %v583
        %v1211 = vadd.f32 %v1210, 1e-05
        %v1212 = vrsqrt.pop %v1211
        %v1213 = vmul.f32 %v1205, %v1212
        %v1215 = vlaneseq
        %v1216 = vshrl.u32 %v1215, 7
        %v1217 = vsub.s32 0, %v1216
        %v1218 = vrot.slane %v1199, %v1217
        %v1220 = vmul.f32 %v1213, %v1218
        %v1222 = vlaneseq
        %v1223 = vshrl.u32 %v1222, 7
        %v1224 = vsub.s32 0, %v1223
        %v1225 = vrot.slane %v1200, %v1224
        %v1227 = vadd.f32 %v1220, %v1225
        %v1228 = vpack.c.bf16 %v1227, %v1227
        %v1229 = vld [vmem:[#allocation17] sm:$0xf]
        %v1230 = vld [vmem:[#allocation17 + $0x4] sm:$0xf]
        %v1231 = vld [vmem:[#allocation17 + $0x8] sm:$0xf]
        %v1232 = vld [vmem:[#allocation17 + $0xc] sm:$0xf]
        %v1233 = vld [vmem:[#allocation18] sm:$0x1]
        %v1235 = vlaneseq
        %v1236 = vshrl.u32 %v1235, 7
        %v1237 = vsub.s32 0, %v1236
        %v1238 = vrot.slane %v1233, %v1237
        %v1244 = vunpack.c.l.b16 %v1229
        %v1245 = vunpack.c.l.b16 %v1230
        %v1246 = vunpack.c.l.b16 %v1231
        %v1247 = vunpack.c.l.b16 %v1232
        %v1248 = vpack.c.b16 %v1245, %v1244
        %v1249 = vpack.c.b16 %v1247, %v1246
        %v1253 = vsel %vm579, %v1228, 0
        %1255 = vmatprep.subr.bf16.mxu0 0
        %1256 = vmatpush1.bf16.msra.mxu0 %v1248
        %1257 = vmatprep.subr.bf16.mxu0 0
        %1258 = vmatpush1.bf16.msra.mxu0 %v1249
        %1259 = vmatprep.subr.bf16.mxu0 0
        %1260 = vmatpush1.bf16.msra.mxu0 0
        %1261 = vmatprep.subr.bf16.mxu0 0
        %1262 = vmatpush1.bf16.msra.mxu0 0
        %1263 = vmatprep.subr.bf16.mxu0 0
        %1264 = vmatpush1.bf16.msra.mxu0 0
        %1265 = vmatprep.subr.bf16.mxu0 0
        %1266 = vmatpush1.bf16.msra.mxu0 0
        %1267 = vmatprep.subr.bf16.mxu0 0
        %1268 = vmatpush1.bf16.msra.mxu0 0
        %1269 = vmatprep.subr.bf16.mxu0 0
        %1270 = vmatpush1.bf16.msra.mxu0 0
        %1271 = vmatprep.subr.bf16.mxu0 0
        %1272 = vmatpush1.bf16.msra.mxu0 0
        %1273 = vmatprep.subr.bf16.mxu0 0
        %1274 = vmatpush1.bf16.msra.mxu0 0
        %1275 = vmatprep.subr.bf16.mxu0 0
        %1276 = vmatpush1.bf16.msra.mxu0 0
        %1277 = vmatprep.subr.bf16.mxu0 0
        %1278 = vmatpush1.bf16.msra.mxu0 0
        %1279 = vmatprep.subr.bf16.mxu0 0
        %1280 = vmatpush1.bf16.msra.mxu0 0
        %1281 = vmatprep.subr.bf16.mxu0 0
        %1282 = vmatpush1.bf16.msra.mxu0 0
        %1283 = vmatprep.subr.bf16.mxu0 0
        %1284 = vmatpush1.bf16.msra.mxu0 0
        %1285 = vmatprep.subr.bf16.mxu0 0
        %1286 = vmatpush1.bf16.msra.mxu0 0
        %1287 = vmatprep.mubr.bf16.mxu0 0
        %1288 = vmatmul.mubr.bf16.gmra.mrb[0].mxu0 %v1253
        %v1289 = vpop.f32.mrb[0].mxu0
        %v1290 = vadd.f32 %v1238, %v1289
        %v1291 = vpop.f32.mrb[0].mxu0
        %v1292 = vpop.f32.mrb[0].mxu0
        %v1293 = vpop.f32.mrb[0].mxu0
        %1294 = vdwg.mxu0
        %v1295 = vmul.f32 %v1290, 0.5
        %v1296 = vmul.f32 %v1290, 0.70710677
        %v1297 = vmax.f32 %v1296, -4.0
        %v1298 = vmin.f32 %v1297, 4.0
        %v1299 = vmul.f32 %v1298, %v1298
        %v1300 = vmul.f32 %v1299, -2.7261424e-10
        %v1301 = vadd.f32 %v1300, 2.7706815e-08
        %v1302 = vmul.f32 %v1301, %v1299
        %v1303 = vadd.f32 %v1302, -2.101024e-06
        %v1304 = vmul.f32 %v1303, %v1299
        %v1305 = vadd.f32 %v1304, -5.6925062e-05
        %v1306 = vmul.f32 %v1305, %v1299
        %v1307 = vadd.f32 %v1306, -0.00073499064
        %v1308 = vmul.f32 %v1307, %v1299
        %v1309 = vadd.f32 %v1308, -0.0029546
        %v1310 = vmul.f32 %v1309, %v1299
        %v1311 = vadd.f32 %v1310, -0.016096033
        %v1312 = vmul.f32 %v1311, %v1298
        %v1313 = vmul.f32 %v1299, -1.45660715e-05
        %v1314 = vadd.f32 %v1313, -0.00021337405
        %v1315 = vmul.f32 %v1314, %v1299
        %v1316 = vadd.f32 %v1315, -0.001682827
        %v1317 = vmul.f32 %v1316, %v1299
        %v1318 = vadd.f32 %v1317, -0.0073733293
        %v1319 = vmul.f32 %v1318, %v1299
        %v1320 = vadd.f32 %v1319, -0.014264739
        %v1321 = vrcp.pop %v1320
        %v1322 = vmul.f32 %v1312, %v1321
        %v1323 = vadd.f32 %v1322, 1.0
        %v1324 = vmul.f32 %v1295, %v1323
        %v1325 = vpack.c.bf16 %v1324, %v1324
        %v1326 = vld [vmem:[#allocation20] sm:$0xf]
        %v1327 = vld [vmem:[#allocation20 + $0x4] sm:$0xf]
        %v1328 = vld [vmem:[#allocation20 + $0x8] sm:$0xf]
        %v1329 = vld [vmem:[#allocation20 + $0xc] sm:$0xf]
        %v1330 = vld [vmem:[#allocation20 + $0x10] sm:$0xf]
        %v1331 = vld [vmem:[#allocation20 + $0x14] sm:$0xf]
        %v1332 = vld [vmem:[#allocation20 + $0x18] sm:$0xf]
        %v1333 = vld [vmem:[#allocation20 + $0x1c] sm:$0xf]
        %v1334 = vld [vmem:[#allocation20 + $0x20] sm:$0xf]
        %v1335 = vld [vmem:[#allocation20 + $0x24] sm:$0xf]
        %v1336 = vld [vmem:[#allocation20 + $0x28] sm:$0xf]
        %v1337 = vld [vmem:[#allocation20 + $0x2c] sm:$0xf]
        %v1338 = vld [vmem:[#allocation20 + $0x30] sm:$0xf]
        %v1339 = vld [vmem:[#allocation20 + $0x34] sm:$0xf]
        %v1340 = vld [vmem:[#allocation20 + $0x38] sm:$0xf]
        %v1341 = vld [vmem:[#allocation20 + $0x3c] sm:$0xf]
        %v1342 = vld [vmem:[#allocation21] sm:$0x1]
        %v1344 = vlaneseq
        %v1345 = vshrl.u32 %v1344, 7
        %v1346 = vsub.s32 0, %v1345
        %v1347 = vrot.slane %v1342, %v1346
        %v1365 = vunpack.c.l.b16 %v1326
        %v1366 = vunpack.c.l.b16 %v1327
        %v1367 = vunpack.c.l.b16 %v1328
        %v1368 = vunpack.c.l.b16 %v1329
        %v1369 = vunpack.c.l.b16 %v1330
        %v1370 = vunpack.c.l.b16 %v1331
        %v1371 = vunpack.c.l.b16 %v1332
        %v1372 = vunpack.c.l.b16 %v1333
        %v1373 = vunpack.c.l.b16 %v1334
        %v1374 = vunpack.c.l.b16 %v1335
        %v1375 = vunpack.c.l.b16 %v1336
        %v1376 = vunpack.c.l.b16 %v1337
        %v1377 = vunpack.c.l.b16 %v1338
        %v1378 = vunpack.c.l.b16 %v1339
        %v1379 = vunpack.c.l.b16 %v1340
        %v1380 = vunpack.c.l.b16 %v1341
        %v1381 = vpack.c.b16 %v1366, %v1365
        %v1382 = vpack.c.b16 %v1368, %v1367
        %v1383 = vpack.c.b16 %v1370, %v1369
        %v1384 = vpack.c.b16 %v1372, %v1371
        %v1385 = vpack.c.b16 %v1374, %v1373
        %v1386 = vpack.c.b16 %v1376, %v1375
        %v1387 = vpack.c.b16 %v1378, %v1377
        %v1388 = vpack.c.b16 %v1380, %v1379
        %1397 = vmatprep.subr.bf16.mxu0 0
        %1398 = vmatpush1.bf16.msra.mxu0 %v1381
        %1399 = vmatprep.subr.bf16.mxu0 0
        %1400 = vmatpush1.bf16.msra.mxu0 %v1382
        %1401 = vmatprep.subr.bf16.mxu0 0
        %1402 = vmatpush1.bf16.msra.mxu0 %v1383
        %1403 = vmatprep.subr.bf16.mxu0 0
        %1404 = vmatpush1.bf16.msra.mxu0 %v1384
        %1405 = vmatprep.subr.bf16.mxu0 0
        %1406 = vmatpush1.bf16.msra.mxu0 %v1385
        %1407 = vmatprep.subr.bf16.mxu0 0
        %1408 = vmatpush1.bf16.msra.mxu0 %v1386
        %1409 = vmatprep.subr.bf16.mxu0 0
        %1410 = vmatpush1.bf16.msra.mxu0 %v1387
        %1411 = vmatprep.subr.bf16.mxu0 0
        %1412 = vmatpush1.bf16.msra.mxu0 %v1388
        %1413 = vmatprep.subr.bf16.mxu0 0
        %1414 = vmatpush1.bf16.msra.mxu0 0
        %1415 = vmatprep.subr.bf16.mxu0 0
        %1416 = vmatpush1.bf16.msra.mxu0 0
        %1417 = vmatprep.subr.bf16.mxu0 0
        %1418 = vmatpush1.bf16.msra.mxu0 0
        %1419 = vmatprep.subr.bf16.mxu0 0
        %1420 = vmatpush1.bf16.msra.mxu0 0
        %1421 = vmatprep.subr.bf16.mxu0 0
        %1422 = vmatpush1.bf16.msra.mxu0 0
        %1423 = vmatprep.subr.bf16.mxu0 0
        %1424 = vmatpush1.bf16.msra.mxu0 0
        %1425 = vmatprep.subr.bf16.mxu0 0
        %1426 = vmatpush1.bf16.msra.mxu0 0
        %1427 = vmatprep.subr.bf16.mxu0 0
        %1428 = vmatpush1.bf16.msra.mxu0 0
        %1429 = vmatprep.mubr.bf16.mxu0 0
        %1430 = vmatmul.mubr.bf16.gmra.mrb[0].mxu0 %v1325
        %v1431 = vpop.f32.mrb[0].mxu0
        %v1432 = vadd.f32 %v1347, %v1431
        %v1433 = vpop.f32.mrb[0].mxu0
        %v1434 = vpop.f32.mrb[0].mxu0
        %v1435 = vpop.f32.mrb[0].mxu0
        %1436 = vdwg.mxu0
        %v1437 = vadd.f32 %v1198, %v1432
        %1438 = vst.msk [vmem:[%s574] sm:$0xff] %vm579, %v1437
        %s1439 = sand.u32 %s300, 1
        %s1440 = scalar_lea.sflag [#allocation5], %s1439
        %s1441 = sand.u32 %s300, 1
        %s1442 = smul.addr %s1441, 8
        %s1443 = scalar_lea.vmem [#allocation23], %s1442
        // Predicated region
        $region117: #{tpu_custom_call.1} parent=67 // pred_check
          %p1444 = pneg %p310
        $region118: #{tpu_custom_call.1} parent=67 // pred_check_branch
          %1446 = sbr.rel (%p1444) target = $region120
        $region119: #{tpu_custom_call.1} parent=67 // pred_region
          %s1448 = ssub.s32 128, 128
          %1449 = vsyncadd %s1440, %s1448
          %s1450 = smul.addr %s35, 128
          %s1451 = scalar_lea.hbm %s12, %s1450
          %s1453 = sshll.u32 %s1443, 4
          %s1454 = int_to_ptr.vmem [resolvable:$true] %s1453
          %1456 = dma.vmem_to_hbm [thread:$0]  %s1454, 128, %s1451, %s1440
        $region120: #{tpu_custom_call.1} parent=67 // pred_fallthru
          _
      $region68: #{tpu_custom_call.1} parent=5 // pred_fallthru
        _
      %p1457 = scmp.le.s32.totalorder 2, %s30
      // Predicated region
      $region121: #{tpu_custom_call.1} parent=5 // pred_check
        %p1458 = pneg %p1457
      $region122: #{tpu_custom_call.1} parent=5 // pred_check_branch
        %1460 = sbr.rel (%p1458) target = $region124
      $region123: #{tpu_custom_call.1} parent=5 // pred_region
        %s1461 = ssub.s32 %s30, 2
        // Predicated region
        $region125: #{tpu_custom_call.1} parent=123 // pred_check
          %p1462 = pneg %p316
        $region126: #{tpu_custom_call.1} parent=123 // pred_check_branch
          %1464 = sbr.rel (%p1462) target = $region128
        $region127: #{tpu_custom_call.1} parent=123 // pred_region
          %s1465 = sand.u32 %s301, 1
          %s1466 = scalar_lea.sflag [#allocation5], %s1465
          %s1467 = sand.u32 %s301, 1
          %s1468 = smul.addr %s1467, 8
          %s1469 = scalar_lea.vmem [#allocation23], %s1468
          %1470 = dma.done %s1466, 128
        $region128: #{tpu_custom_call.1} parent=123 // pred_fallthru
          _
      $region124: #{tpu_custom_call.1} parent=5 // pred_fallthru
        _
    $region6: #{tpu_custom_call.1} parent=1 // loop_footer
      %s34 = sadd.s32 1, %s30
    $region7: #{tpu_custom_call.1} parent=1 // loop_footer_branch
      %29 = sbr.rel target = $region3
    $region8: #{tpu_custom_call.1} parent=1 // loop_exit
      _
    %1471 = vsyncpa [#allocation4], 1
    %s1472 = scalar_lea.sflag [#allocation4], 1
    %1473 = vsyncpa %s1472, 1
    %1474 = vsyncpa [#allocation7], 1
    %1475 = vsyncpa [#allocation10], 1
    %1476 = vsyncpa [#allocation13], 1
    %1477 = vsyncpa [#allocation16], 1
    %1478 = vsyncpa [#allocation19], 1
    %1479 = vsyncpa [#allocation22], 1
    %1480 = vsyncpa [#allocation5], 1
    %s1481 = scalar_lea.sflag [#allocation5], 1
    %1482 = vsyncpa %s1481, 1

</llo_original>
